<compile_context>
chip_gen: v7x
topology: tpu7x:2x2x1
jax: 0.10.0
libtpu: 0.0.40
codegen_flags: <defaults>
</compile_context>

<pallas_src>
import functools

import jax
import jax.numpy as jnp
from jax import lax
from jax.experimental import pallas as pl
from jax.experimental.pallas import tpu as pltpu

EPS = 1e-5  # nn.LayerNorm default eps


# ----------------------------------------------------------------------------
# In-kernel helpers
# ----------------------------------------------------------------------------
def _layernorm(x, gamma, beta):
    # x: (N, D); gamma/beta: (1, D). Biased variance, matching PyTorch LayerNorm.
    mean = jnp.mean(x, axis=-1, keepdims=True)
    var = jnp.mean(jnp.square(x - mean), axis=-1, keepdims=True)
    return (x - mean) * lax.rsqrt(var + EPS) * gamma + beta


# ----------------------------------------------------------------------------
# Fused whole-transformer kernel: grid = (batch, depth)
# ----------------------------------------------------------------------------
def transformer_kernel(x_ref,
                       a_g_ref, a_b_ref, wqkv_ref, wout_ref, bout_ref,
                       f_g_ref, f_b_ref, w1_ref, b1_ref, w2_ref, b2_ref,
                       fin_g_ref, fin_b_ref,
                       o_ref,
                       state_ref, head_ref,
                       *, heads, dim_head):
    d = pl.program_id(1)
    last = pl.num_programs(1) - 1
    inner = heads * dim_head
    scale = dim_head ** -0.5

    # Load this batch element from HBM only once (depth == 0); afterwards the
    # activation stays resident in the f32 VMEM scratch across the depth loop.
    @pl.when(d == 0)
    def _():
        state_ref[...] = x_ref[0]

    x = state_ref[...]                                        # (N, D) f32

    # ---------------- Attention block (pre-norm + residual) ----------------
    xn = _layernorm(x, a_g_ref[0], a_b_ref[0])                # (N, D) f32
    qkv = jnp.dot(xn.astype(jnp.bfloat16), wqkv_ref[0],
                  preferred_element_type=jnp.float32)         # (N, 3*inner)

    for h in range(heads):                                    # static unroll
        lo = h * dim_head
        hi = lo + dim_head
        # fold 1/sqrt(dh) into q (N x dh multiply instead of N x N)
        qh = (qkv[:, lo:hi] * scale).astype(jnp.bfloat16)           # (N, dh)
        kh = qkv[:, inner + lo:inner + hi].astype(jnp.bfloat16)     # (N, dh)
        vh = qkv[:, 2 * inner + lo:2 * inner + hi].astype(jnp.bfloat16)
        # q @ k^T without an explicit transpose (contract the dh axes)
        dots = lax.dot_general(qh, kh, (((1,), (1,)), ((), ())),
                               preferred_element_type=jnp.float32)  # (N, N)
        dots = dots - jnp.max(dots, axis=-1, keepdims=True)
        e = jnp.exp(dots)
        attn = e * pl.reciprocal(jnp.sum(e, axis=-1, keepdims=True),
                                 approx=True)
        # write this head's result straight into the scratch slab
        head_ref[:, lo:hi] = jnp.dot(attn.astype(jnp.bfloat16), vh,
                                     preferred_element_type=jnp.float32)

    attn_out = jnp.dot(head_ref[...].astype(jnp.bfloat16), wout_ref[0],
                       preferred_element_type=jnp.float32) + bout_ref[0]
    x = x + attn_out                                          # residual

    # ---------------- FeedForward block (pre-norm + residual) --------------
    xn = _layernorm(x, f_g_ref[0], f_b_ref[0])
    h1 = jnp.dot(xn.astype(jnp.bfloat16), w1_ref[0],
                 preferred_element_type=jnp.float32) + b1_ref[0]    # (N, H)
    # exact (erf-based) GELU, matching the nn.GELU default
    h1 = 0.5 * h1 * (1.0 + lax.erf(h1 * 0.7071067811865476))
    y = jnp.dot(h1.astype(jnp.bfloat16), w2_ref[0],
                preferred_element_type=jnp.float32) + b2_ref[0]     # (N, D)
    x = x + y                                                 # residual

    # Keep the activation resident for the next layer; skip the (dead) store
    # on the final layer.
    @pl.when(d != last)
    def _():
        state_ref[...] = x

    # Final LayerNorm -> the only HBM output write, done at the last layer.
    @pl.when(d == last)
    def _():
        o_ref[0] = _layernorm(x, fin_g_ref[...], fin_b_ref[...]).astype(
            o_ref.dtype)


# ----------------------------------------------------------------------------
# pallas_call wrapper
# ----------------------------------------------------------------------------
def transformer_forward(x, params, *, heads, dim_head):
    B, N, D = x.shape
    depth = params["w_qkv"].shape[0]
    inner = heads * dim_head

    def per_layer(arr):          # (depth, r, c) stacked per-layer param
        return pl.BlockSpec(
            (1,) + arr.shape[1:],
            lambda b, d, _nd=arr.ndim - 1: (d,) + (0,) * _nd)

    def shared(arr):             # params constant over the whole grid
        return pl.BlockSpec(arr.shape,
                            lambda b, d, _nd=arr.ndim: (0,) * _nd)

    p = params
    layer_params = [p["attn_ln_g"], p["attn_ln_b"], p["w_qkv"], p["w_out"],
                    p["b_out"], p["ff_ln_g"], p["ff_ln_b"], p["w1"], p["b1"],
                    p["w2"], p["b2"]]

    in_specs = [pl.BlockSpec((1, N, D), lambda b, d: (b, 0, 0))]
    in_specs += [per_layer(a) for a in layer_params]
    in_specs += [shared(p["final_ln_g"]), shared(p["final_ln_b"])]

    kernel = functools.partial(transformer_kernel, heads=heads,
                               dim_head=dim_head)
    return pl.pallas_call(
        kernel,
        out_shape=jax.ShapeDtypeStruct((B, N, D), x.dtype),
        grid=(B, depth),
        in_specs=in_specs,
        out_specs=pl.BlockSpec((1, N, D), lambda b, d: (b, 0, 0)),
        scratch_shapes=[pltpu.VMEM((N, D), jnp.float32),       # resident x
                        pltpu.VMEM((N, inner), jnp.float32)],  # head slab
        compiler_params=pltpu.CompilerParams(
            dimension_semantics=("parallel", "arbitrary"),
            vmem_limit_bytes=48 * 1024 * 1024),
    )(x, *layer_params, p["final_ln_g"], p["final_ln_b"])


# ----------------------------------------------------------------------------
# Deterministic parameter init
#   weights stored (in, out) in bf16 (y = x @ W + b); biases / LN params f32.
#   Per-layer params stacked along a leading depth axis.
# ----------------------------------------------------------------------------
def init_params(key, dim, depth, heads, dim_head, mlp_dim):
    inner = heads * dim_head
    ks = jax.random.split(key, 8)

    def w(k, shape):
        return (0.05 * jax.random.normal(k, shape, jnp.float32)
                ).astype(jnp.bfloat16)

    def b(k, shape):
        return 0.01 * jax.random.normal(k, shape, jnp.float32)

    return {
        "attn_ln_g": jnp.ones((depth, 1, dim), jnp.float32),
        "attn_ln_b": jnp.zeros((depth, 1, dim), jnp.float32),
        "w_qkv": w(ks[0], (depth, dim, 3 * inner)),
        "w_out": w(ks[1], (depth, inner, dim)),
        "b_out": b(ks[2], (depth, 1, dim)),
        "ff_ln_g": jnp.ones((depth, 1, dim), jnp.float32),
        "ff_ln_b": jnp.zeros((depth, 1, dim), jnp.float32),
        "w1": w(ks[3], (depth, dim, mlp_dim)),
        "b1": b(ks[4], (depth, 1, mlp_dim)),
        "w2": w(ks[5], (depth, mlp_dim, dim)),
        "b2": b(ks[6], (depth, 1, dim)),
        "final_ln_g": jnp.ones((1, dim), jnp.float32),
        "final_ln_b": jnp.zeros((1, dim), jnp.float32),
    }


# ----------------------------------------------------------------------------
# Pure-JAX reference (f32 math, bf16 weights dequantized to f32)
# ----------------------------------------------------------------------------
def _ln_ref(x, g, b):
    mean = x.mean(-1, keepdims=True)
    var = ((x - mean) ** 2).mean(-1, keepdims=True)
    return (x - mean) / jnp.sqrt(var + EPS) * g + b


def transformer_reference(x, params, heads, dim_head):
    B, N, D = x.shape
    depth = params["w_qkv"].shape[0]
    inner = heads * dim_head
    f32 = lambda a: a.astype(jnp.float32)
    for l in range(depth):
        # attention
        xn = _ln_ref(x, params["attn_ln_g"][l], params["attn_ln_b"][l])
        qkv = jnp.einsum("bnd,de->bne", xn, f32(params["w_qkv"][l]))
        q, k, v = jnp.split(qkv, 3, axis=-1)
        sp = lambda t: t.reshape(B, N, heads, dim_head).transpose(0, 2, 1, 3)
        q, k, v = sp(q), sp(k), sp(v)
        dots = jnp.einsum("bhnd,bhmd->bhnm", q, k) * dim_head ** -0.5
        attn = jax.nn.softmax(dots, axis=-1)
        out = jnp.einsum("bhnm,bhmd->bhnd", attn, v)
        out = out.transpose(0, 2, 1, 3).reshape(B, N, inner)
        out = jnp.einsum("bni,id->bnd", out,
                         f32(params["w_out"][l])) + params["b_out"][l]
        x = x + out
        # feedforward
        xn = _ln_ref(x, params["ff_ln_g"][l], params["ff_ln_b"][l])
        h = jnp.einsum("bnd,dh->bnh", xn,
                       f32(params["w1"][l])) + params["b1"][l]
        h = jax.nn.gelu(h, approximate=False)
        y = jnp.einsum("bnh,hd->bnd", h,
                       f32(params["w2"][l])) + params["b2"][l]
        x = x + y
    return _ln_ref(x, params["final_ln_g"], params["final_ln_b"])


# ----------------------------------------------------------------------------
if __name__ == "__main__":
    B, N, D = 2, 8, 32
    depth, heads, dim_head, mlp_dim = 2, 4, 8, 64

    key = jax.random.PRNGKey(0)
    key, kx = jax.random.split(key)
    params = init_params(key, D, depth, heads, dim_head, mlp_dim)
    x = jax.random.normal(kx, (B, N, D), jnp.float32)

    y = transformer_forward(x, params, heads=heads, dim_head=dim_head)
    y = jax.block_until_ready(y)

    y_ref = transformer_reference(x, params, heads, dim_head)
    assert y.shape == (B, N, D)
    max_err = float(jnp.max(jnp.abs(y - y_ref)))
    # bf16 matmul inputs (f32 accumulation) + approx reciprocal -> ~1e-2 tol
    assert jnp.allclose(y, y_ref, atol=2e-2, rtol=2e-2), max_err

    print("KERNEL_OK")
</pallas_src>

<mosaic_0001>
module attributes {stable_mosaic.version = 11 : i64} {
  func.func @transformer_kernel(%arg0: i32, %arg1: i32, %arg2: memref<1x8x32xf32, #tpu.memory_space<vmem>>, %arg3: memref<1x1x32xf32, #tpu.memory_space<vmem>>, %arg4: memref<1x1x32xf32, #tpu.memory_space<vmem>>, %arg5: memref<1x32x96xbf16, #tpu.memory_space<vmem>>, %arg6: memref<1x32x32xbf16, #tpu.memory_space<vmem>>, %arg7: memref<1x1x32xf32, #tpu.memory_space<vmem>>, %arg8: memref<1x1x32xf32, #tpu.memory_space<vmem>>, %arg9: memref<1x1x32xf32, #tpu.memory_space<vmem>>, %arg10: memref<1x32x64xbf16, #tpu.memory_space<vmem>>, %arg11: memref<1x1x64xf32, #tpu.memory_space<vmem>>, %arg12: memref<1x64x32xbf16, #tpu.memory_space<vmem>>, %arg13: memref<1x1x32xf32, #tpu.memory_space<vmem>>, %arg14: memref<1x32xf32, #tpu.memory_space<vmem>>, %arg15: memref<1x32xf32, #tpu.memory_space<vmem>>, %arg16: memref<1x8x32xf32, #tpu.memory_space<vmem>>, %arg17: memref<8x32xf32, #tpu.memory_space<vmem>>, %arg18: memref<8x32xf32, #tpu.memory_space<vmem>>) attributes {dimension_semantics = [#tpu.dimension_semantics<parallel>, #tpu.dimension_semantics<arbitrary>], iteration_bounds = array<i64: 2, 2>, scalar_prefetch = 0 : i64, scratch_operands = 2 : i64, tpu.core_type = #tpu.core_type<tc>, window_params = [{transform_indices = @transform_0, window_bounds = array<i64: 1, 8, 32>}, {transform_indices = @transform_1, window_bounds = array<i64: 1, 1, 32>}, {transform_indices = @transform_2, window_bounds = array<i64: 1, 1, 32>}, {transform_indices = @transform_3, window_bounds = array<i64: 1, 32, 96>}, {transform_indices = @transform_4, window_bounds = array<i64: 1, 32, 32>}, {transform_indices = @transform_5, window_bounds = array<i64: 1, 1, 32>}, {transform_indices = @transform_6, window_bounds = array<i64: 1, 1, 32>}, {transform_indices = @transform_7, window_bounds = array<i64: 1, 1, 32>}, {transform_indices = @transform_8, window_bounds = array<i64: 1, 32, 64>}, {transform_indices = @transform_9, window_bounds = array<i64: 1, 1, 64>}, {transform_indices = @transform_10, window_bounds = array<i64: 1, 64, 32>}, {transform_indices = @transform_11, window_bounds = array<i64: 1, 1, 32>}, {pipeline_mode = #tpu.pipeline_mode<synchronous>, transform_indices = @transform_12, window_bounds = array<i64: 1, 32>}, {pipeline_mode = #tpu.pipeline_mode<synchronous>, transform_indices = @transform_13, window_bounds = array<i64: 1, 32>}, {transform_indices = @transform_14, window_bounds = array<i64: 1, 8, 32>}]} {
    %c0_i32 = arith.constant 0 : i32
    %0 = arith.cmpi eq, %arg1, %c0_i32 : i32
    %1 = arith.extui %0 : i1 to i32
    %c0_i32_0 = arith.constant 0 : i32
    %2 = arith.cmpi ne, %1, %c0_i32_0 : i32
    scf.if %2 {
      %c0_81 = arith.constant 0 : index
      %c0_82 = arith.constant 0 : index
      %c0_83 = arith.constant 0 : index
      %189 = vector.load %arg2[%c0_81, %c0_82, %c0_83] : memref<1x8x32xf32, #tpu.memory_space<vmem>>, vector<1x8x32xf32>
      %190 = vector.shape_cast %189 : vector<1x8x32xf32> to vector<8x32xf32>
      %c0_84 = arith.constant 0 : index
      %c0_85 = arith.constant 0 : index
      %191 = vector.load %arg17[%c0_84, %c0_85] : memref<8x32xf32, #tpu.memory_space<vmem>>, vector<8x32xf32>
      tpu.vector_store %arg17[%c0_84, %c0_85], %190 {strides = array<i32>} : memref<8x32xf32, #tpu.memory_space<vmem>>, vector<8x32xf32>,
    } else {
    }
    %c0 = arith.constant 0 : index
    %c0_1 = arith.constant 0 : index
    %3 = vector.load %arg17[%c0, %c0_1] : memref<8x32xf32, #tpu.memory_space<vmem>>, vector<8x32xf32>
    %c0_2 = arith.constant 0 : index
    %c0_3 = arith.constant 0 : index
    %c0_4 = arith.constant 0 : index
    %4 = vector.load %arg3[%c0_2, %c0_3, %c0_4] : memref<1x1x32xf32, #tpu.memory_space<vmem>>, vector<1x1x32xf32>
    %5 = vector.shape_cast %4 : vector<1x1x32xf32> to vector<1x32xf32>
    %c0_5 = arith.constant 0 : index
    %c0_6 = arith.constant 0 : index
    %c0_7 = arith.constant 0 : index
    %6 = vector.load %arg4[%c0_5, %c0_6, %c0_7] : memref<1x1x32xf32, #tpu.memory_space<vmem>>, vector<1x1x32xf32>
    %7 = vector.shape_cast %6 : vector<1x1x32xf32> to vector<1x32xf32>
    %cst = arith.constant dense<0.000000e+00> : vector<8xf32>
    %8 = vector.multi_reduction <add>, %3, %cst [1] : vector<8x32xf32> to vector<8xf32>
    %9 = vector.shape_cast %8 : vector<8xf32> to vector<8x1xf32>
    %cst_8 = arith.constant 3.200000e+01 : f32
    %10 = vector.broadcast %cst_8 : f32 to vector<8x1xf32>
    %11 = arith.divf %9, %10 : vector<8x1xf32>
    %12 = vector.broadcast %11 : vector<8x1xf32> to vector<8x32xf32>
    %13 = arith.subf %3, %12 : vector<8x32xf32>
    %14 = arith.mulf %13, %13 : vector<8x32xf32>
    %cst_9 = arith.constant dense<0.000000e+00> : vector<8xf32>
    %15 = vector.multi_reduction <add>, %14, %cst_9 [1] : vector<8x32xf32> to vector<8xf32>
    %16 = vector.shape_cast %15 : vector<8xf32> to vector<8x1xf32>
    %cst_10 = arith.constant 3.200000e+01 : f32
    %17 = vector.broadcast %cst_10 : f32 to vector<8x1xf32>
    %18 = arith.divf %16, %17 : vector<8x1xf32>
    %19 = vector.broadcast %11 : vector<8x1xf32> to vector<8x32xf32>
    %20 = arith.subf %3, %19 : vector<8x32xf32>
    %cst_11 = arith.constant 9.99999974E-6 : f32
    %21 = vector.broadcast %cst_11 : f32 to vector<8x1xf32>
    %22 = arith.addf %18, %21 : vector<8x1xf32>
    %23 = math.rsqrt %22 : vector<8x1xf32>
    %24 = vector.broadcast %23 : vector<8x1xf32> to vector<8x32xf32>
    %25 = arith.mulf %20, %24 : vector<8x32xf32>
    %26 = vector.broadcast %5 : vector<1x32xf32> to vector<8x32xf32>
    %27 = arith.mulf %25, %26 : vector<8x32xf32>
    %28 = vector.broadcast %7 : vector<1x32xf32> to vector<8x32xf32>
    %29 = arith.addf %27, %28 : vector<8x32xf32>
    %30 = arith.truncf %29 : vector<8x32xf32> to vector<8x32xbf16>
    %c0_12 = arith.constant 0 : index
    %c0_13 = arith.constant 0 : index
    %c0_14 = arith.constant 0 : index
    %31 = vector.load %arg5[%c0_12, %c0_13, %c0_14] : memref<1x32x96xbf16, #tpu.memory_space<vmem>>, vector<1x32x96xbf16>
    %32 = vector.shape_cast %31 : vector<1x32x96xbf16> to vector<32x96xbf16>
    %cst_15 = arith.constant dense<0.000000e+00> : vector<8x96xf32>
    %33 = tpu.matmul %30, %32, %cst_15 {dimension_numbers = #tpu.dot_dimension_numbers<[1], [0], [0], [1], [0, 0, 1, 1], [], []>} : vector<8x32xbf16>, vector<32x96xbf16>, vector<8x96xf32> -> vector<8x96xf32>
    %34 = vector.extract_strided_slice %33 {offsets = [0, 0], sizes = [8, 8], strides = [1, 1]} : vector<8x96xf32> to vector<8x8xf32>
    %cst_16 = arith.constant 0.353553385 : f32
    %35 = vector.broadcast %cst_16 : f32 to vector<8x8xf32>
    %36 = arith.mulf %34, %35 : vector<8x8xf32>
    %37 = arith.truncf %36 : vector<8x8xf32> to vector<8x8xbf16>
    %38 = vector.extract_strided_slice %33 {offsets = [0, 32], sizes = [8, 8], strides = [1, 1]} : vector<8x96xf32> to vector<8x8xf32>
    %39 = arith.truncf %38 : vector<8x8xf32> to vector<8x8xbf16>
    %40 = vector.extract_strided_slice %33 {offsets = [0, 64], sizes = [8, 8], strides = [1, 1]} : vector<8x96xf32> to vector<8x8xf32>
    %41 = arith.truncf %40 : vector<8x8xf32> to vector<8x8xbf16>
    %cst_17 = arith.constant dense<0.000000e+00> : vector<8x8xf32>
    %42 = tpu.matmul %37, %39, %cst_17 {dimension_numbers = #tpu.dot_dimension_numbers<[1], [1], [0], [0], [0, 0, 1, 0], [], []>} : vector<8x8xbf16>, vector<8x8xbf16>, vector<8x8xf32> -> vector<8x8xf32>
    %cst_18 = arith.constant dense<0xFF800000> : vector<8xf32>
    %43 = vector.multi_reduction <maximumf>, %42, %cst_18 [1] : vector<8x8xf32> to vector<8xf32>
    %44 = vector.shape_cast %43 : vector<8xf32> to vector<8x1xf32>
    %45 = vector.broadcast %44 : vector<8x1xf32> to vector<8x8xf32>
    %46 = arith.subf %42, %45 : vector<8x8xf32>
    %47 = math.exp %46 : vector<8x8xf32>
    %cst_19 = arith.constant dense<0.000000e+00> : vector<8xf32>
    %48 = vector.multi_reduction <add>, %47, %cst_19 [1] : vector<8x8xf32> to vector<8xf32>
    %49 = vector.shape_cast %48 : vector<8xf32> to vector<8x1xf32>
    %50 = tpu.reciprocal %49 {approx = true} : vector<8x1xf32> -> vector<8x1xf32>
    %51 = vector.broadcast %50 : vector<8x1xf32> to vector<8x8xf32>
    %52 = arith.mulf %47, %51 : vector<8x8xf32>
    %53 = arith.truncf %52 : vector<8x8xf32> to vector<8x8xbf16>
    %cst_20 = arith.constant dense<0.000000e+00> : vector<8x8xf32>
    %54 = tpu.matmul %53, %41, %cst_20 {dimension_numbers = #tpu.dot_dimension_numbers<[1], [0], [0], [1], [0, 0, 1, 1], [], []>} : vector<8x8xbf16>, vector<8x8xbf16>, vector<8x8xf32> -> vector<8x8xf32>
    %c0_21 = arith.constant 0 : index
    %c0_22 = arith.constant 0 : index
    %55 = vector.load %arg18[%c0_21, %c0_22] : memref<8x32xf32, #tpu.memory_space<vmem>>, vector<8x8xf32>
    tpu.vector_store %arg18[%c0_21, %c0_22], %54 {strides = array<i32>} : memref<8x32xf32, #tpu.memory_space<vmem>>, vector<8x8xf32>,
    %56 = vector.extract_strided_slice %33 {offsets = [0, 8], sizes = [8, 8], strides = [1, 1]} : vector<8x96xf32> to vector<8x8xf32>
    %cst_23 = arith.constant 0.353553385 : f32
    %57 = vector.broadcast %cst_23 : f32 to vector<8x8xf32>
    %58 = arith.mulf %56, %57 : vector<8x8xf32>
    %59 = arith.truncf %58 : vector<8x8xf32> to vector<8x8xbf16>
    %60 = vector.extract_strided_slice %33 {offsets = [0, 40], sizes = [8, 8], strides = [1, 1]} : vector<8x96xf32> to vector<8x8xf32>
    %61 = arith.truncf %60 : vector<8x8xf32> to vector<8x8xbf16>
    %62 = vector.extract_strided_slice %33 {offsets = [0, 72], sizes = [8, 8], strides = [1, 1]} : vector<8x96xf32> to vector<8x8xf32>
    %63 = arith.truncf %62 : vector<8x8xf32> to vector<8x8xbf16>
    %cst_24 = arith.constant dense<0.000000e+00> : vector<8x8xf32>
    %64 = tpu.matmul %59, %61, %cst_24 {dimension_numbers = #tpu.dot_dimension_numbers<[1], [1], [0], [0], [0, 0, 1, 0], [], []>} : vector<8x8xbf16>, vector<8x8xbf16>, vector<8x8xf32> -> vector<8x8xf32>
    %cst_25 = arith.constant dense<0xFF800000> : vector<8xf32>
    %65 = vector.multi_reduction <maximumf>, %64, %cst_25 [1] : vector<8x8xf32> to vector<8xf32>
    %66 = vector.shape_cast %65 : vector<8xf32> to vector<8x1xf32>
    %67 = vector.broadcast %66 : vector<8x1xf32> to vector<8x8xf32>
    %68 = arith.subf %64, %67 : vector<8x8xf32>
    %69 = math.exp %68 : vector<8x8xf32>
    %cst_26 = arith.constant dense<0.000000e+00> : vector<8xf32>
    %70 = vector.multi_reduction <add>, %69, %cst_26 [1] : vector<8x8xf32> to vector<8xf32>
    %71 = vector.shape_cast %70 : vector<8xf32> to vector<8x1xf32>
    %72 = tpu.reciprocal %71 {approx = true} : vector<8x1xf32> -> vector<8x1xf32>
    %73 = vector.broadcast %72 : vector<8x1xf32> to vector<8x8xf32>
    %74 = arith.mulf %69, %73 : vector<8x8xf32>
    %75 = arith.truncf %74 : vector<8x8xf32> to vector<8x8xbf16>
    %cst_27 = arith.constant dense<0.000000e+00> : vector<8x8xf32>
    %76 = tpu.matmul %75, %63, %cst_27 {dimension_numbers = #tpu.dot_dimension_numbers<[1], [0], [0], [1], [0, 0, 1, 1], [], []>} : vector<8x8xbf16>, vector<8x8xbf16>, vector<8x8xf32> -> vector<8x8xf32>
    %c0_28 = arith.constant 0 : index
    %c8 = arith.constant 8 : index
    %77 = vector.load %arg18[%c0_28, %c8] : memref<8x32xf32, #tpu.memory_space<vmem>>, vector<8x8xf32>
    tpu.vector_store %arg18[%c0_28, %c8], %76 {strides = array<i32>} : memref<8x32xf32, #tpu.memory_space<vmem>>, vector<8x8xf32>,
    %78 = vector.extract_strided_slice %33 {offsets = [0, 16], sizes = [8, 8], strides = [1, 1]} : vector<8x96xf32> to vector<8x8xf32>
    %cst_29 = arith.constant 0.353553385 : f32
    %79 = vector.broadcast %cst_29 : f32 to vector<8x8xf32>
    %80 = arith.mulf %78, %79 : vector<8x8xf32>
    %81 = arith.truncf %80 : vector<8x8xf32> to vector<8x8xbf16>
    %82 = vector.extract_strided_slice %33 {offsets = [0, 48], sizes = [8, 8], strides = [1, 1]} : vector<8x96xf32> to vector<8x8xf32>
    %83 = arith.truncf %82 : vector<8x8xf32> to vector<8x8xbf16>
    %84 = vector.extract_strided_slice %33 {offsets = [0, 80], sizes = [8, 8], strides = [1, 1]} : vector<8x96xf32> to vector<8x8xf32>
    %85 = arith.truncf %84 : vector<8x8xf32> to vector<8x8xbf16>
    %cst_30 = arith.constant dense<0.000000e+00> : vector<8x8xf32>
    %86 = tpu.matmul %81, %83, %cst_30 {dimension_numbers = #tpu.dot_dimension_numbers<[1], [1], [0], [0], [0, 0, 1, 0], [], []>} : vector<8x8xbf16>, vector<8x8xbf16>, vector<8x8xf32> -> vector<8x8xf32>
    %cst_31 = arith.constant dense<0xFF800000> : vector<8xf32>
    %87 = vector.multi_reduction <maximumf>, %86, %cst_31 [1] : vector<8x8xf32> to vector<8xf32>
    %88 = vector.shape_cast %87 : vector<8xf32> to vector<8x1xf32>
    %89 = vector.broadcast %88 : vector<8x1xf32> to vector<8x8xf32>
    %90 = arith.subf %86, %89 : vector<8x8xf32>
    %91 = math.exp %90 : vector<8x8xf32>
    %cst_32 = arith.constant dense<0.000000e+00> : vector<8xf32>
    %92 = vector.multi_reduction <add>, %91, %cst_32 [1] : vector<8x8xf32> to vector<8xf32>
    %93 = vector.shape_cast %92 : vector<8xf32> to vector<8x1xf32>
    %94 = tpu.reciprocal %93 {approx = true} : vector<8x1xf32> -> vector<8x1xf32>
    %95 = vector.broadcast %94 : vector<8x1xf32> to vector<8x8xf32>
    %96 = arith.mulf %91, %95 : vector<8x8xf32>
    %97 = arith.truncf %96 : vector<8x8xf32> to vector<8x8xbf16>
    %cst_33 = arith.constant dense<0.000000e+00> : vector<8x8xf32>
    %98 = tpu.matmul %97, %85, %cst_33 {dimension_numbers = #tpu.dot_dimension_numbers<[1], [0], [0], [1], [0, 0, 1, 1], [], []>} : vector<8x8xbf16>, vector<8x8xbf16>, vector<8x8xf32> -> vector<8x8xf32>
    %c0_34 = arith.constant 0 : index
    %c16 = arith.constant 16 : index
    %99 = vector.load %arg18[%c0_34, %c16] : memref<8x32xf32, #tpu.memory_space<vmem>>, vector<8x8xf32>
    tpu.vector_store %arg18[%c0_34, %c16], %98 {strides = array<i32>} : memref<8x32xf32, #tpu.memory_space<vmem>>, vector<8x8xf32>,
    %100 = vector.extract_strided_slice %33 {offsets = [0, 24], sizes = [8, 8], strides = [1, 1]} : vector<8x96xf32> to vector<8x8xf32>
    %cst_35 = arith.constant 0.353553385 : f32
    %101 = vector.broadcast %cst_35 : f32 to vector<8x8xf32>
    %102 = arith.mulf %100, %101 : vector<8x8xf32>
    %103 = arith.truncf %102 : vector<8x8xf32> to vector<8x8xbf16>
    %104 = vector.extract_strided_slice %33 {offsets = [0, 56], sizes = [8, 8], strides = [1, 1]} : vector<8x96xf32> to vector<8x8xf32>
    %105 = arith.truncf %104 : vector<8x8xf32> to vector<8x8xbf16>
    %106 = vector.extract_strided_slice %33 {offsets = [0, 88], sizes = [8, 8], strides = [1, 1]} : vector<8x96xf32> to vector<8x8xf32>
    %107 = arith.truncf %106 : vector<8x8xf32> to vector<8x8xbf16>
    %cst_36 = arith.constant dense<0.000000e+00> : vector<8x8xf32>
    %108 = tpu.matmul %103, %105, %cst_36 {dimension_numbers = #tpu.dot_dimension_numbers<[1], [1], [0], [0], [0, 0, 1, 0], [], []>} : vector<8x8xbf16>, vector<8x8xbf16>, vector<8x8xf32> -> vector<8x8xf32>
    %cst_37 = arith.constant dense<0xFF800000> : vector<8xf32>
    %109 = vector.multi_reduction <maximumf>, %108, %cst_37 [1] : vector<8x8xf32> to vector<8xf32>
    %110 = vector.shape_cast %109 : vector<8xf32> to vector<8x1xf32>
    %111 = vector.broadcast %110 : vector<8x1xf32> to vector<8x8xf32>
    %112 = arith.subf %108, %111 : vector<8x8xf32>
    %113 = math.exp %112 : vector<8x8xf32>
    %cst_38 = arith.constant dense<0.000000e+00> : vector<8xf32>
    %114 = vector.multi_reduction <add>, %113, %cst_38 [1] : vector<8x8xf32> to vector<8xf32>
    %115 = vector.shape_cast %114 : vector<8xf32> to vector<8x1xf32>
    %116 = tpu.reciprocal %115 {approx = true} : vector<8x1xf32> -> vector<8x1xf32>
    %117 = vector.broadcast %116 : vector<8x1xf32> to vector<8x8xf32>
    %118 = arith.mulf %113, %117 : vector<8x8xf32>
    %119 = arith.truncf %118 : vector<8x8xf32> to vector<8x8xbf16>
    %cst_39 = arith.constant dense<0.000000e+00> : vector<8x8xf32>
    %120 = tpu.matmul %119, %107, %cst_39 {dimension_numbers = #tpu.dot_dimension_numbers<[1], [0], [0], [1], [0, 0, 1, 1], [], []>} : vector<8x8xbf16>, vector<8x8xbf16>, vector<8x8xf32> -> vector<8x8xf32>
    %c0_40 = arith.constant 0 : index
    %c24 = arith.constant 24 : index
    %121 = vector.load %arg18[%c0_40, %c24] : memref<8x32xf32, #tpu.memory_space<vmem>>, vector<8x8xf32>
    tpu.vector_store %arg18[%c0_40, %c24], %120 {strides = array<i32>} : memref<8x32xf32, #tpu.memory_space<vmem>>, vector<8x8xf32>,
    %c0_41 = arith.constant 0 : index
    %c0_42 = arith.constant 0 : index
    %122 = vector.load %arg18[%c0_41, %c0_42] : memref<8x32xf32, #tpu.memory_space<vmem>>, vector<8x32xf32>
    %123 = arith.truncf %122 : vector<8x32xf32> to vector<8x32xbf16>
    %c0_43 = arith.constant 0 : index
    %c0_44 = arith.constant 0 : index
    %c0_45 = arith.constant 0 : index
    %124 = vector.load %arg6[%c0_43, %c0_44, %c0_45] : memref<1x32x32xbf16, #tpu.memory_space<vmem>>, vector<1x32x32xbf16>
    %125 = vector.shape_cast %124 : vector<1x32x32xbf16> to vector<32x32xbf16>
    %cst_46 = arith.constant dense<0.000000e+00> : vector<8x32xf32>
    %126 = tpu.matmul %123, %125, %cst_46 {dimension_numbers = #tpu.dot_dimension_numbers<[1], [0], [0], [1], [0, 0, 1, 1], [], []>} : vector<8x32xbf16>, vector<32x32xbf16>, vector<8x32xf32> -> vector<8x32xf32>
    %c0_47 = arith.constant 0 : index
    %c0_48 = arith.constant 0 : index
    %c0_49 = arith.constant 0 : index
    %127 = vector.load %arg7[%c0_47, %c0_48, %c0_49] : memref<1x1x32xf32, #tpu.memory_space<vmem>>, vector<1x1x32xf32>
    %128 = vector.shape_cast %127 : vector<1x1x32xf32> to vector<1x32xf32>
    %129 = vector.broadcast %128 : vector<1x32xf32> to vector<8x32xf32>
    %130 = arith.addf %126, %129 : vector<8x32xf32>
    %131 = arith.addf %3, %130 : vector<8x32xf32>
    %c0_50 = arith.constant 0 : index
    %c0_51 = arith.constant 0 : index
    %c0_52 = arith.constant 0 : index
    %132 = vector.load %arg8[%c0_50, %c0_51, %c0_52] : memref<1x1x32xf32, #tpu.memory_space<vmem>>, vector<1x1x32xf32>
    %133 = vector.shape_cast %132 : vector<1x1x32xf32> to vector<1x32xf32>
    %c0_53 = arith.constant 0 : index
    %c0_54 = arith.constant 0 : index
    %c0_55 = arith.constant 0 : index
    %134 = vector.load %arg9[%c0_53, %c0_54, %c0_55] : memref<1x1x32xf32, #tpu.memory_space<vmem>>, vector<1x1x32xf32>
    %135 = vector.shape_cast %134 : vector<1x1x32xf32> to vector<1x32xf32>
    %cst_56 = arith.constant dense<0.000000e+00> : vector<8xf32>
    %136 = vector.multi_reduction <add>, %131, %cst_56 [1] : vector<8x32xf32> to vector<8xf32>
    %137 = vector.shape_cast %136 : vector<8xf32> to vector<8x1xf32>
    %cst_57 = arith.constant 3.200000e+01 : f32
    %138 = vector.broadcast %cst_57 : f32 to vector<8x1xf32>
    %139 = arith.divf %137, %138 : vector<8x1xf32>
    %140 = vector.broadcast %139 : vector<8x1xf32> to vector<8x32xf32>
    %141 = arith.subf %131, %140 : vector<8x32xf32>
    %142 = arith.mulf %141, %141 : vector<8x32xf32>
    %cst_58 = arith.constant dense<0.000000e+00> : vector<8xf32>
    %143 = vector.multi_reduction <add>, %142, %cst_58 [1] : vector<8x32xf32> to vector<8xf32>
    %144 = vector.shape_cast %143 : vector<8xf32> to vector<8x1xf32>
    %cst_59 = arith.constant 3.200000e+01 : f32
    %145 = vector.broadcast %cst_59 : f32 to vector<8x1xf32>
    %146 = arith.divf %144, %145 : vector<8x1xf32>
    %147 = vector.broadcast %139 : vector<8x1xf32> to vector<8x32xf32>
    %148 = arith.subf %131, %147 : vector<8x32xf32>
    %cst_60 = arith.constant 9.99999974E-6 : f32
    %149 = vector.broadcast %cst_60 : f32 to vector<8x1xf32>
    %150 = arith.addf %146, %149 : vector<8x1xf32>
    %151 = math.rsqrt %150 : vector<8x1xf32>
    %152 = vector.broadcast %151 : vector<8x1xf32> to vector<8x32xf32>
    %153 = arith.mulf %148, %152 : vector<8x32xf32>
    %154 = vector.broadcast %133 : vector<1x32xf32> to vector<8x32xf32>
    %155 = arith.mulf %153, %154 : vector<8x32xf32>
    %156 = vector.broadcast %135 : vector<1x32xf32> to vector<8x32xf32>
    %157 = arith.addf %155, %156 : vector<8x32xf32>
    %158 = arith.truncf %157 : vector<8x32xf32> to vector<8x32xbf16>
    %c0_61 = arith.constant 0 : index
    %c0_62 = arith.constant 0 : index
    %c0_63 = arith.constant 0 : index
    %159 = vector.load %arg10[%c0_61, %c0_62, %c0_63] : memref<1x32x64xbf16, #tpu.memory_space<vmem>>, vector<1x32x64xbf16>
    %160 = vector.shape_cast %159 : vector<1x32x64xbf16> to vector<32x64xbf16>
    %cst_64 = arith.constant dense<0.000000e+00> : vector<8x64xf32>
    %161 = tpu.matmul %158, %160, %cst_64 {dimension_numbers = #tpu.dot_dimension_numbers<[1], [0], [0], [1], [0, 0, 1, 1], [], []>} : vector<8x32xbf16>, vector<32x64xbf16>, vector<8x64xf32> -> vector<8x64xf32>
    %c0_65 = arith.constant 0 : index
    %c0_66 = arith.constant 0 : index
    %c0_67 = arith.constant 0 : index
    %162 = vector.load %arg11[%c0_65, %c0_66, %c0_67] : memref<1x1x64xf32, #tpu.memory_space<vmem>>, vector<1x1x64xf32>
    %163 = vector.shape_cast %162 : vector<1x1x64xf32> to vector<1x64xf32>
    %164 = vector.broadcast %163 : vector<1x64xf32> to vector<8x64xf32>
    %165 = arith.addf %161, %164 : vector<8x64xf32>
    %cst_68 = arith.constant 5.000000e-01 : f32
    %166 = vector.broadcast %cst_68 : f32 to vector<8x64xf32>
    %167 = arith.mulf %166, %165 : vector<8x64xf32>
    %cst_69 = arith.constant 0.707106769 : f32
    %168 = vector.broadcast %cst_69 : f32 to vector<8x64xf32>
    %169 = arith.mulf %165, %168 : vector<8x64xf32>
    %170 = math.erf %169 : vector<8x64xf32>
    %cst_70 = arith.constant 1.000000e+00 : f32
    %171 = vector.broadcast %cst_70 : f32 to vector<8x64xf32>
    %172 = arith.addf %171, %170 : vector<8x64xf32>
    %173 = arith.mulf %167, %172 : vector<8x64xf32>
    %174 = arith.truncf %173 : vector<8x64xf32> to vector<8x64xbf16>
    %c0_71 = arith.constant 0 : index
    %c0_72 = arith.constant 0 : index
    %c0_73 = arith.constant 0 : index
    %175 = vector.load %arg12[%c0_71, %c0_72, %c0_73] : memref<1x64x32xbf16, #tpu.memory_space<vmem>>, vector<1x64x32xbf16>
    %176 = vector.shape_cast %175 : vector<1x64x32xbf16> to vector<64x32xbf16>
    %cst_74 = arith.constant dense<0.000000e+00> : vector<8x32xf32>
    %177 = tpu.matmul %174, %176, %cst_74 {dimension_numbers = #tpu.dot_dimension_numbers<[1], [0], [0], [1], [0, 0, 1, 1], [], []>} : vector<8x64xbf16>, vector<64x32xbf16>, vector<8x32xf32> -> vector<8x32xf32>
    %c0_75 = arith.constant 0 : index
    %c0_76 = arith.constant 0 : index
    %c0_77 = arith.constant 0 : index
    %178 = vector.load %arg13[%c0_75, %c0_76, %c0_77] : memref<1x1x32xf32, #tpu.memory_space<vmem>>, vector<1x1x32xf32>
    %179 = vector.shape_cast %178 : vector<1x1x32xf32> to vector<1x32xf32>
    %180 = vector.broadcast %179 : vector<1x32xf32> to vector<8x32xf32>
    %181 = arith.addf %177, %180 : vector<8x32xf32>
    %182 = arith.addf %131, %181 : vector<8x32xf32>
    %c1_i32 = arith.constant 1 : i32
    %183 = arith.cmpi ne, %arg1, %c1_i32 : i32
    %184 = arith.extui %183 : i1 to i32
    %c0_i32_78 = arith.constant 0 : i32
    %185 = arith.cmpi ne, %184, %c0_i32_78 : i32
    scf.if %185 {
      %c0_81 = arith.constant 0 : index
      %c0_82 = arith.constant 0 : index
      %189 = vector.load %arg17[%c0_81, %c0_82] : memref<8x32xf32, #tpu.memory_space<vmem>>, vector<8x32xf32>
      tpu.vector_store %arg17[%c0_81, %c0_82], %182 {strides = array<i32>} : memref<8x32xf32, #tpu.memory_space<vmem>>, vector<8x32xf32>,
    } else {
    }
    %c1_i32_79 = arith.constant 1 : i32
    %186 = arith.cmpi eq, %arg1, %c1_i32_79 : i32
    %187 = arith.extui %186 : i1 to i32
    %c0_i32_80 = arith.constant 0 : i32
    %188 = arith.cmpi ne, %187, %c0_i32_80 : i32
    scf.if %188 {
      %c0_81 = arith.constant 0 : index
      %c0_82 = arith.constant 0 : index
      %189 = vector.load %arg14[%c0_81, %c0_82] : memref<1x32xf32, #tpu.memory_space<vmem>>, vector<1x32xf32>
      %c0_83 = arith.constant 0 : index
      %c0_84 = arith.constant 0 : index
      %190 = vector.load %arg15[%c0_83, %c0_84] : memref<1x32xf32, #tpu.memory_space<vmem>>, vector<1x32xf32>
      %cst_85 = arith.constant dense<0.000000e+00> : vector<8xf32>
      %191 = vector.multi_reduction <add>, %182, %cst_85 [1] : vector<8x32xf32> to vector<8xf32>
      %192 = vector.shape_cast %191 : vector<8xf32> to vector<8x1xf32>
      %cst_86 = arith.constant 3.200000e+01 : f32
      %193 = vector.broadcast %cst_86 : f32 to vector<8x1xf32>
      %194 = arith.divf %192, %193 : vector<8x1xf32>
      %195 = vector.broadcast %194 : vector<8x1xf32> to vector<8x32xf32>
      %196 = arith.subf %182, %195 : vector<8x32xf32>
      %197 = arith.mulf %196, %196 : vector<8x32xf32>
      %cst_87 = arith.constant dense<0.000000e+00> : vector<8xf32>
      %198 = vector.multi_reduction <add>, %197, %cst_87 [1] : vector<8x32xf32> to vector<8xf32>
      %199 = vector.shape_cast %198 : vector<8xf32> to vector<8x1xf32>
      %cst_88 = arith.constant 3.200000e+01 : f32
      %200 = vector.broadcast %cst_88 : f32 to vector<8x1xf32>
      %201 = arith.divf %199, %200 : vector<8x1xf32>
      %202 = vector.broadcast %194 : vector<8x1xf32> to vector<8x32xf32>
      %203 = arith.subf %182, %202 : vector<8x32xf32>
      %cst_89 = arith.constant 9.99999974E-6 : f32
      %204 = vector.broadcast %cst_89 : f32 to vector<8x1xf32>
      %205 = arith.addf %201, %204 : vector<8x1xf32>
      %206 = math.rsqrt %205 : vector<8x1xf32>
      %207 = vector.broadcast %206 : vector<8x1xf32> to vector<8x32xf32>
      %208 = arith.mulf %203, %207 : vector<8x32xf32>
      %209 = vector.broadcast %189 : vector<1x32xf32> to vector<8x32xf32>
      %210 = arith.mulf %208, %209 : vector<8x32xf32>
      %211 = vector.broadcast %190 : vector<1x32xf32> to vector<8x32xf32>
      %212 = arith.addf %210, %211 : vector<8x32xf32>
      %c0_90 = arith.constant 0 : index
      %c0_91 = arith.constant 0 : index
      %c0_92 = arith.constant 0 : index
      %213 = vector.load %arg16[%c0_90, %c0_91, %c0_92] : memref<1x8x32xf32, #tpu.memory_space<vmem>>, vector<1x8x32xf32>
      %214 = vector.shape_cast %213 : vector<1x8x32xf32> to vector<8x32xf32>
      %215 = vector.shape_cast %212 : vector<8x32xf32> to vector<1x8x32xf32>
      tpu.vector_store %arg16[%c0_90, %c0_91, %c0_92], %215 {strides = array<i32>} : memref<1x8x32xf32, #tpu.memory_space<vmem>>, vector<1x8x32xf32>,
    } else {
    }
    return
  }
  func.func @transform_0(%arg0: i32, %arg1: i32) -> (i32, i32, i32) {
    %c0_i32 = arith.constant 0 : i32
    %c0_i32_0 = arith.constant 0 : i32
    %c0_i32_1 = arith.constant 0 : i32
    return %arg0, %c0_i32, %c0_i32_0 : i32, i32, i32
  }
  func.func @transform_1(%arg0: i32, %arg1: i32) -> (i32, i32, i32) {
    %c0_i32 = arith.constant 0 : i32
    %c0_i32_0 = arith.constant 0 : i32
    %c0_i32_1 = arith.constant 0 : i32
    return %arg1, %c0_i32, %c0_i32_0 : i32, i32, i32
  }
  func.func @transform_2(%arg0: i32, %arg1: i32) -> (i32, i32, i32) {
    %c0_i32 = arith.constant 0 : i32
    %c0_i32_0 = arith.constant 0 : i32
    %c0_i32_1 = arith.constant 0 : i32
    return %arg1, %c0_i32, %c0_i32_0 : i32, i32, i32
  }
  func.func @transform_3(%arg0: i32, %arg1: i32) -> (i32, i32, i32) {
    %c0_i32 = arith.constant 0 : i32
    %c0_i32_0 = arith.constant 0 : i32
    %c0_i32_1 = arith.constant 0 : i32
    return %arg1, %c0_i32, %c0_i32_0 : i32, i32, i32
  }
  func.func @transform_4(%arg0: i32, %arg1: i32) -> (i32, i32, i32) {
    %c0_i32 = arith.constant 0 : i32
    %c0_i32_0 = arith.constant 0 : i32
    %c0_i32_1 = arith.constant 0 : i32
    return %arg1, %c0_i32, %c0_i32_0 : i32, i32, i32
  }
  func.func @transform_5(%arg0: i32, %arg1: i32) -> (i32, i32, i32) {
    %c0_i32 = arith.constant 0 : i32
    %c0_i32_0 = arith.constant 0 : i32
    %c0_i32_1 = arith.constant 0 : i32
    return %arg1, %c0_i32, %c0_i32_0 : i32, i32, i32
  }
  func.func @transform_6(%arg0: i32, %arg1: i32) -> (i32, i32, i32) {
    %c0_i32 = arith.constant 0 : i32
    %c0_i32_0 = arith.constant 0 : i32
    %c0_i32_1 = arith.constant 0 : i32
    return %arg1, %c0_i32, %c0_i32_0 : i32, i32, i32
  }
  func.func @transform_7(%arg0: i32, %arg1: i32) -> (i32, i32, i32) {
    %c0_i32 = arith.constant 0 : i32
    %c0_i32_0 = arith.constant 0 : i32
    %c0_i32_1 = arith.constant 0 : i32
    return %arg1, %c0_i32, %c0_i32_0 : i32, i32, i32
  }
  func.func @transform_8(%arg0: i32, %arg1: i32) -> (i32, i32, i32) {
    %c0_i32 = arith.constant 0 : i32
    %c0_i32_0 = arith.constant 0 : i32
    %c0_i32_1 = arith.constant 0 : i32
    return %arg1, %c0_i32, %c0_i32_0 : i32, i32, i32
  }
  func.func @transform_9(%arg0: i32, %arg1: i32) -> (i32, i32, i32) {
    %c0_i32 = arith.constant 0 : i32
    %c0_i32_0 = arith.constant 0 : i32
    %c0_i32_1 = arith.constant 0 : i32
    return %arg1, %c0_i32, %c0_i32_0 : i32, i32, i32
  }
  func.func @transform_10(%arg0: i32, %arg1: i32) -> (i32, i32, i32) {
    %c0_i32 = arith.constant 0 : i32
    %c0_i32_0 = arith.constant 0 : i32
    %c0_i32_1 = arith.constant 0 : i32
    return %arg1, %c0_i32, %c0_i32_0 : i32, i32, i32
  }
  func.func @transform_11(%arg0: i32, %arg1: i32) -> (i32, i32, i32) {
    %c0_i32 = arith.constant 0 : i32
    %c0_i32_0 = arith.constant 0 : i32
    %c0_i32_1 = arith.constant 0 : i32
    return %arg1, %c0_i32, %c0_i32_0 : i32, i32, i32
  }
  func.func @transform_12(%arg0: i32, %arg1: i32) -> (i32, i32) {
    %c0_i32 = arith.constant 0 : i32
    %c0_i32_0 = arith.constant 0 : i32
    %c0_i32_1 = arith.constant 0 : i32
    return %c0_i32, %c0_i32_0 : i32, i32
  }
  func.func @transform_13(%arg0: i32, %arg1: i32) -> (i32, i32) {
    %c0_i32 = arith.constant 0 : i32
    %c0_i32_0 = arith.constant 0 : i32
    %c0_i32_1 = arith.constant 0 : i32
    return %c0_i32, %c0_i32_0 : i32, i32
  }
  func.func @transform_14(%arg0: i32, %arg1: i32) -> (i32, i32, i32) {
    %c0_i32 = arith.constant 0 : i32
    %c0_i32_0 = arith.constant 0 : i32
    %c0_i32_1 = arith.constant 0 : i32
    return %arg0, %c0_i32, %c0_i32_0 : i32, i32, i32
  }
}

</mosaic_0001>

<llo_original>
// kernel: tpu_custom_call.1
$region0: #{tpu_custom_call.1}
  #allocation0 [shape = 'u32[]', space=smem, size = 0x4, offset = 0x4, fixed_abs, tag = 'smem constant byte address 0x4 - core index']
  #allocation1 [shape = 'u32[144,128]{1,0:T(1,128)}', space=vmem, size = 0x12000, scoped, tag = 'internal scratch']
  #allocation2 [shape = 'f32[8,32]{1,0:T(8,128)}', space=vmem, size = 0x1000, scoped, tag = 'scratch operand']
  #allocation3 [shape = 'f32[8,32]{1,0:T(8,128)}', space=vmem, size = 0x1000, scoped, tag = 'scratch operand']
  %s0 = inlined_call_operand.hbm [shape: f32[2,8,32], index: 0, kind: input, shape index: {}]
  %s1 = inlined_call_operand.vmem [shape: f32[2,1,32], index: 1, kind: input, shape index: {}]
  %s2 = inlined_call_operand.vmem [shape: f32[2,1,32], index: 2, kind: input, shape index: {}]
  %s3 = inlined_call_operand.vmem [shape: bf16[2,32,96], index: 3, kind: input, shape index: {}]
  %s4 = inlined_call_operand.vmem [shape: bf16[2,32,32], index: 4, kind: input, shape index: {}]
  %s5 = inlined_call_operand.hbm [shape: f32[2,1,32], index: 5, kind: input, shape index: {}]
  %s6 = inlined_call_operand.hbm [shape: f32[2,1,32], index: 6, kind: input, shape index: {}]
  %s7 = inlined_call_operand.hbm [shape: f32[2,1,32], index: 7, kind: input, shape index: {}]
  %s8 = inlined_call_operand.vmem [shape: bf16[2,32,64], index: 8, kind: input, shape index: {}]
  %s9 = inlined_call_operand.hbm [shape: f32[2,1,64], index: 9, kind: input, shape index: {}]
  %s10 = inlined_call_operand.vmem [shape: bf16[2,64,32], index: 10, kind: input, shape index: {}]
  %s11 = inlined_call_operand.vmem [shape: f32[2,1,32], index: 11, kind: input, shape index: {}]
  %s12 = inlined_call_operand.vmem [shape: f32[1,32], index: 12, kind: input, shape index: {}]
  %s13 = inlined_call_operand.vmem [shape: f32[1,32], index: 13, kind: input, shape index: {}]
  %s14 = inlined_call_operand.hbm [shape: f32[2,8,32], index: 14, kind: output, shape index: {}]
  %s15 = sld [smem:[#allocation0]]
  $region121: #{tpu_custom_call.1} parent=0
    _
  %s17 = ssub.s32 1, %s15
  %s18 = scalar_select 0, %s17, %s15
  $region1: #{tpu_custom_call.1} parent=0
    #allocation4 [shape = 'u8[8192]{0}', space=vmem, size = 0x2000, scoped, tag = 'input window, operand 0']
    #allocation5 [shape = 's32[2]{0}', space=sflag, size = 0x8, scoped, tag = 'scoped memory for tpu_custom_call.1']
    #allocation6 [shape = 's32[2]{0}', space=sflag, size = 0x8, scoped, tag = 'scoped memory for tpu_custom_call.1']
    #allocation7 [shape = 'u8[1024]{0}', space=vmem, size = 0x400, scoped, tag = 'input window, operand 5']
    #allocation8 [shape = 's32[2]{0}', space=sflag, size = 0x8, scoped, tag = 'scoped memory for tpu_custom_call.1']
    #allocation9 [shape = 'u8[1024]{0}', space=vmem, size = 0x400, scoped, tag = 'input window, operand 6']
    #allocation10 [shape = 'u8[1024]{0}', space=vmem, size = 0x400, scoped, tag = 'input window, operand 7']
    #allocation11 [shape = 's32[2]{0}', space=sflag, size = 0x8, scoped, tag = 'scoped memory for tpu_custom_call.1']
    #allocation12 [shape = 'u8[1024]{0}', space=vmem, size = 0x400, scoped, tag = 'input window, operand 9']
    #allocation13 [shape = 'u8[8192]{0}', space=vmem, size = 0x2000, scoped, tag = 'output window, operand 0']
    %19 = vsyncpa [#allocation5], 0
    %s20 = scalar_lea.sflag [#allocation5], 1
    %21 = vsyncpa %s20, 0
    %22 = vsyncpa [#allocation8], 0
    %s23 = scalar_lea.sflag [#allocation8], 1
    %24 = vsyncpa %s23, 0
    %25 = vsyncpa [#allocation11], 0
    %s26 = scalar_lea.sflag [#allocation11], 1
    %27 = vsyncpa %s26, 0
    %28 = vsyncpa [#allocation6], 0
    %s29 = scalar_lea.sflag [#allocation6], 1
    %30 = vsyncpa %s29, 0
    loop: start=0, step=1, limit=6
    $region2: #{tpu_custom_call.1} parent=1 // loop_pre_header
      _
    $region3: #{tpu_custom_call.1} parent=1 // loop_header
      %s32 = sphi 0, %s36
      %p33 = scmp.ge.s32.totalorder %s32, 6
      %s39 = sphi 0, %s51
      %s40 = sphi 0, %s47
      %s41 = sphi 0, %s39
      %s42 = sphi 0, %s40
      %s43 = sphi 0, %s41
      %s44 = sphi 0, %s42
      %s54 = sphi 0, %s56
      %s57 = sphi 0, %s54
      %s58 = sphi 0, %s57
      %s74 = sphi 0, %s58
      %s80 = sphi 0, %s82
      %s83 = sphi 0, %s80
      %s84 = sphi 0, %s83
      %s100 = sphi 0, %s84
      %s106 = sphi 0, %s108
      %s109 = sphi 0, %s106
      %s110 = sphi 0, %s109
      %s126 = sphi 0, %s110
      %s132 = sphi 0, %s134
      %s135 = sphi 0, %s132
      %s136 = sphi 0, %s135
      %s152 = sphi 0, %s136
      %s158 = sphi 0, %s160
      %s161 = sphi 0, %s158
      %s162 = sphi 0, %s161
      %s178 = sphi 0, %s162
      %s184 = sphi 0, %s186
      %s187 = sphi 0, %s184
      %s188 = sphi 0, %s187
      %s204 = sphi 0, %s188
      %s210 = sphi 0, %s212
      %s213 = sphi 0, %s210
      %s214 = sphi 0, %s213
      %s230 = sphi 0, %s214
      %s236 = sphi 0, %s238
      %s239 = sphi 0, %s236
      %s240 = sphi 0, %s239
      %s256 = sphi 0, %s240
      %s262 = sphi 0, %s264
      %s265 = sphi 0, %s262
      %s266 = sphi 0, %s265
      %s282 = sphi 0, %s266
      %s288 = sphi 0, %s290
      %s291 = sphi 0, %s288
      %s292 = sphi 0, %s291
      %s308 = sphi 0, %s292
      %s314 = sphi 0, %s316
      %s317 = sphi 0, %s314
      %s318 = sphi 0, %s317
      %s334 = sphi 0, %s318
      %s340 = sphi 0, %s342
      %s343 = sphi 0, %s340
      %s344 = sphi 0, %s343
      %s360 = sphi 0, %s344
      %s364 = sphi 0, %s364
      %s366 = sphi 0, %s364
      %s367 = sphi 0, %s366
      %s381 = sphi 0, %s367
      %s385 = sphi 0, %s385
      %s387 = sphi 0, %s385
      %s388 = sphi 0, %s387
      %s402 = sphi 0, %s388
      %s408 = sphi 0, %s410
      %s411 = sphi 0, %s408
      %s412 = sphi 0, %s411
      %s428 = sphi 0, %s412
    $region4: #{tpu_custom_call.1} parent=1 // loop_header_branch
      %35 = sbr.rel (%p33) target = $region8
    $region5: #{tpu_custom_call.1} parent=1 // loop_body
      %s37 = ssub.s32 %s32, 1
      %s38 = ssub.s32 %s32, 2
      %s45 = sadd.s32 1, %s40
      %p46 = scmp.ge.s32.totalorder %s45, 2
      %s47 = scalar_select %p46, 0, %s45
      %s48 = sadd.s32 1, %s39
      %s49 = scalar_select %p46, %s48, %s39
      %p50 = scmp.ge.s32.totalorder %s49, 2
      %s51 = scalar_select %p50, 0, %s49
      %s52 = ssub.s32 %s39, %s51
      %p53 = scmp.eq.s32.totalorder %s52, 0
      %s55 = sadd.s32 %s54, 1
      %s56 = scalar_select %p53, %s54, %s55
      %p59 = pneg %p53
      %p60 = scmp.eq.s32.totalorder %s32, 3
      %p61 = por %p59, %p60
      %p62 = scmp.ne.s32.totalorder %s54, %s57
      %p63 = scmp.eq.s32.totalorder %s32, 0
      %p64 = por %p62, %p63
      %p65 = scmp.ne.s32.totalorder %s54, %s57
      %p66 = scmp.eq.s32.totalorder %s37, 3
      %p67 = por %p65, %p66
      %p68 = scmp.ne.s32.totalorder %s57, %s58
      %p69 = scmp.eq.s32.totalorder %s37, 0
      %p70 = por %p68, %p69
      %p71 = scmp.ne.s32.totalorder %s57, %s58
      %p72 = scmp.eq.s32.totalorder %s38, 3
      %p73 = por %p71, %p72
      %p75 = scmp.ne.s32.totalorder %s58, %s74
      %p76 = scmp.eq.s32.totalorder %s38, 0
      %p77 = por %p75, %p76
      %s78 = ssub.s32 %s40, %s47
      %p79 = scmp.eq.s32.totalorder %s78, 0
      %s81 = sadd.s32 %s80, 1
      %s82 = scalar_select %p79, %s80, %s81
      %p85 = pneg %p79
      %p86 = scmp.eq.s32.totalorder %s32, 3
      %p87 = por %p85, %p86
      %p88 = scmp.ne.s32.totalorder %s80, %s83
      %p89 = scmp.eq.s32.totalorder %s32, 0
      %p90 = por %p88, %p89
      %p91 = scmp.ne.s32.totalorder %s80, %s83
      %p92 = scmp.eq.s32.totalorder %s37, 3
      %p93 = por %p91, %p92
      %p94 = scmp.ne.s32.totalorder %s83, %s84
      %p95 = scmp.eq.s32.totalorder %s37, 0
      %p96 = por %p94, %p95
      %p97 = scmp.ne.s32.totalorder %s83, %s84
      %p98 = scmp.eq.s32.totalorder %s38, 3
      %p99 = por %p97, %p98
      %p101 = scmp.ne.s32.totalorder %s84, %s100
      %p102 = scmp.eq.s32.totalorder %s38, 0
      %p103 = por %p101, %p102
      %s104 = ssub.s32 %s40, %s47
      %p105 = scmp.eq.s32.totalorder %s104, 0
      %s107 = sadd.s32 %s106, 1
      %s108 = scalar_select %p105, %s106, %s107
      %p111 = pneg %p105
      %p112 = scmp.eq.s32.totalorder %s32, 3
      %p113 = por %p111, %p112
      %p114 = scmp.ne.s32.totalorder %s106, %s109
      %p115 = scmp.eq.s32.totalorder %s32, 0
      %p116 = por %p114, %p115
      %p117 = scmp.ne.s32.totalorder %s106, %s109
      %p118 = scmp.eq.s32.totalorder %s37, 3
      %p119 = por %p117, %p118
      %p120 = scmp.ne.s32.totalorder %s109, %s110
      %p121 = scmp.eq.s32.totalorder %s37, 0
      %p122 = por %p120, %p121
      %p123 = scmp.ne.s32.totalorder %s109, %s110
      %p124 = scmp.eq.s32.totalorder %s38, 3
      %p125 = por %p123, %p124
      %p127 = scmp.ne.s32.totalorder %s110, %s126
      %p128 = scmp.eq.s32.totalorder %s38, 0
      %p129 = por %p127, %p128
      %s130 = ssub.s32 %s40, %s47
      %p131 = scmp.eq.s32.totalorder %s130, 0
      %s133 = sadd.s32 %s132, 1
      %s134 = scalar_select %p131, %s132, %s133
      %p137 = pneg %p131
      %p138 = scmp.eq.s32.totalorder %s32, 3
      %p139 = por %p137, %p138
      %p140 = scmp.ne.s32.totalorder %s132, %s135
      %p141 = scmp.eq.s32.totalorder %s32, 0
      %p142 = por %p140, %p141
      %p143 = scmp.ne.s32.totalorder %s132, %s135
      %p144 = scmp.eq.s32.totalorder %s37, 3
      %p145 = por %p143, %p144
      %p146 = scmp.ne.s32.totalorder %s135, %s136
      %p147 = scmp.eq.s32.totalorder %s37, 0
      %p148 = por %p146, %p147
      %p149 = scmp.ne.s32.totalorder %s135, %s136
      %p150 = scmp.eq.s32.totalorder %s38, 3
      %p151 = por %p149, %p150
      %p153 = scmp.ne.s32.totalorder %s136, %s152
      %p154 = scmp.eq.s32.totalorder %s38, 0
      %p155 = por %p153, %p154
      %s156 = ssub.s32 %s40, %s47
      %p157 = scmp.eq.s32.totalorder %s156, 0
      %s159 = sadd.s32 %s158, 1
      %s160 = scalar_select %p157, %s158, %s159
      %p163 = pneg %p157
      %p164 = scmp.eq.s32.totalorder %s32, 3
      %p165 = por %p163, %p164
      %p166 = scmp.ne.s32.totalorder %s158, %s161
      %p167 = scmp.eq.s32.totalorder %s32, 0
      %p168 = por %p166, %p167
      %p169 = scmp.ne.s32.totalorder %s158, %s161
      %p170 = scmp.eq.s32.totalorder %s37, 3
      %p171 = por %p169, %p170
      %p172 = scmp.ne.s32.totalorder %s161, %s162
      %p173 = scmp.eq.s32.totalorder %s37, 0
      %p174 = por %p172, %p173
      %p175 = scmp.ne.s32.totalorder %s161, %s162
      %p176 = scmp.eq.s32.totalorder %s38, 3
      %p177 = por %p175, %p176
      %p179 = scmp.ne.s32.totalorder %s162, %s178
      %p180 = scmp.eq.s32.totalorder %s38, 0
      %p181 = por %p179, %p180
      %s182 = ssub.s32 %s40, %s47
      %p183 = scmp.eq.s32.totalorder %s182, 0
      %s185 = sadd.s32 %s184, 1
      %s186 = scalar_select %p183, %s184, %s185
      %p189 = pneg %p183
      %p190 = scmp.eq.s32.totalorder %s32, 3
      %p191 = por %p189, %p190
      %p192 = scmp.ne.s32.totalorder %s184, %s187
      %p193 = scmp.eq.s32.totalorder %s32, 0
      %p194 = por %p192, %p193
      %p195 = scmp.ne.s32.totalorder %s184, %s187
      %p196 = scmp.eq.s32.totalorder %s37, 3
      %p197 = por %p195, %p196
      %p198 = scmp.ne.s32.totalorder %s187, %s188
      %p199 = scmp.eq.s32.totalorder %s37, 0
      %p200 = por %p198, %p199
      %p201 = scmp.ne.s32.totalorder %s187, %s188
      %p202 = scmp.eq.s32.totalorder %s38, 3
      %p203 = por %p201, %p202
      %p205 = scmp.ne.s32.totalorder %s188, %s204
      %p206 = scmp.eq.s32.totalorder %s38, 0
      %p207 = por %p205, %p206
      %s208 = ssub.s32 %s40, %s47
      %p209 = scmp.eq.s32.totalorder %s208, 0
      %s211 = sadd.s32 %s210, 1
      %s212 = scalar_select %p209, %s210, %s211
      %p215 = pneg %p209
      %p216 = scmp.eq.s32.totalorder %s32, 3
      %p217 = por %p215, %p216
      %p218 = scmp.ne.s32.totalorder %s210, %s213
      %p219 = scmp.eq.s32.totalorder %s32, 0
      %p220 = por %p218, %p219
      %p221 = scmp.ne.s32.totalorder %s210, %s213
      %p222 = scmp.eq.s32.totalorder %s37, 3
      %p223 = por %p221, %p222
      %p224 = scmp.ne.s32.totalorder %s213, %s214
      %p225 = scmp.eq.s32.totalorder %s37, 0
      %p226 = por %p224, %p225
      %p227 = scmp.ne.s32.totalorder %s213, %s214
      %p228 = scmp.eq.s32.totalorder %s38, 3
      %p229 = por %p227, %p228
      %p231 = scmp.ne.s32.totalorder %s214, %s230
      %p232 = scmp.eq.s32.totalorder %s38, 0
      %p233 = por %p231, %p232
      %s234 = ssub.s32 %s40, %s47
      %p235 = scmp.eq.s32.totalorder %s234, 0
      %s237 = sadd.s32 %s236, 1
      %s238 = scalar_select %p235, %s236, %s237
      %p241 = pneg %p235
      %p242 = scmp.eq.s32.totalorder %s32, 3
      %p243 = por %p241, %p242
      %p244 = scmp.ne.s32.totalorder %s236, %s239
      %p245 = scmp.eq.s32.totalorder %s32, 0
      %p246 = por %p244, %p245
      %p247 = scmp.ne.s32.totalorder %s236, %s239
      %p248 = scmp.eq.s32.totalorder %s37, 3
      %p249 = por %p247, %p248
      %p250 = scmp.ne.s32.totalorder %s239, %s240
      %p251 = scmp.eq.s32.totalorder %s37, 0
      %p252 = por %p250, %p251
      %p253 = scmp.ne.s32.totalorder %s239, %s240
      %p254 = scmp.eq.s32.totalorder %s38, 3
      %p255 = por %p253, %p254
      %p257 = scmp.ne.s32.totalorder %s240, %s256
      %p258 = scmp.eq.s32.totalorder %s38, 0
      %p259 = por %p257, %p258
      %s260 = ssub.s32 %s40, %s47
      %p261 = scmp.eq.s32.totalorder %s260, 0
      %s263 = sadd.s32 %s262, 1
      %s264 = scalar_select %p261, %s262, %s263
      %p267 = pneg %p261
      %p268 = scmp.eq.s32.totalorder %s32, 3
      %p269 = por %p267, %p268
      %p270 = scmp.ne.s32.totalorder %s262, %s265
      %p271 = scmp.eq.s32.totalorder %s32, 0
      %p272 = por %p270, %p271
      %p273 = scmp.ne.s32.totalorder %s262, %s265
      %p274 = scmp.eq.s32.totalorder %s37, 3
      %p275 = por %p273, %p274
      %p276 = scmp.ne.s32.totalorder %s265, %s266
      %p277 = scmp.eq.s32.totalorder %s37, 0
      %p278 = por %p276, %p277
      %p279 = scmp.ne.s32.totalorder %s265, %s266
      %p280 = scmp.eq.s32.totalorder %s38, 3
      %p281 = por %p279, %p280
      %p283 = scmp.ne.s32.totalorder %s266, %s282
      %p284 = scmp.eq.s32.totalorder %s38, 0
      %p285 = por %p283, %p284
      %s286 = ssub.s32 %s40, %s47
      %p287 = scmp.eq.s32.totalorder %s286, 0
      %s289 = sadd.s32 %s288, 1
      %s290 = scalar_select %p287, %s288, %s289
      %p293 = pneg %p287
      %p294 = scmp.eq.s32.totalorder %s32, 3
      %p295 = por %p293, %p294
      %p296 = scmp.ne.s32.totalorder %s288, %s291
      %p297 = scmp.eq.s32.totalorder %s32, 0
      %p298 = por %p296, %p297
      %p299 = scmp.ne.s32.totalorder %s288, %s291
      %p300 = scmp.eq.s32.totalorder %s37, 3
      %p301 = por %p299, %p300
      %p302 = scmp.ne.s32.totalorder %s291, %s292
      %p303 = scmp.eq.s32.totalorder %s37, 0
      %p304 = por %p302, %p303
      %p305 = scmp.ne.s32.totalorder %s291, %s292
      %p306 = scmp.eq.s32.totalorder %s38, 3
      %p307 = por %p305, %p306
      %p309 = scmp.ne.s32.totalorder %s292, %s308
      %p310 = scmp.eq.s32.totalorder %s38, 0
      %p311 = por %p309, %p310
      %s312 = ssub.s32 %s40, %s47
      %p313 = scmp.eq.s32.totalorder %s312, 0
      %s315 = sadd.s32 %s314, 1
      %s316 = scalar_select %p313, %s314, %s315
      %p319 = pneg %p313
      %p320 = scmp.eq.s32.totalorder %s32, 3
      %p321 = por %p319, %p320
      %p322 = scmp.ne.s32.totalorder %s314, %s317
      %p323 = scmp.eq.s32.totalorder %s32, 0
      %p324 = por %p322, %p323
      %p325 = scmp.ne.s32.totalorder %s314, %s317
      %p326 = scmp.eq.s32.totalorder %s37, 3
      %p327 = por %p325, %p326
      %p328 = scmp.ne.s32.totalorder %s317, %s318
      %p329 = scmp.eq.s32.totalorder %s37, 0
      %p330 = por %p328, %p329
      %p331 = scmp.ne.s32.totalorder %s317, %s318
      %p332 = scmp.eq.s32.totalorder %s38, 3
      %p333 = por %p331, %p332
      %p335 = scmp.ne.s32.totalorder %s318, %s334
      %p336 = scmp.eq.s32.totalorder %s38, 0
      %p337 = por %p335, %p336
      %s338 = ssub.s32 %s40, %s47
      %p339 = scmp.eq.s32.totalorder %s338, 0
      %s341 = sadd.s32 %s340, 1
      %s342 = scalar_select %p339, %s340, %s341
      %p345 = pneg %p339
      %p346 = scmp.eq.s32.totalorder %s32, 3
      %p347 = por %p345, %p346
      %p348 = scmp.ne.s32.totalorder %s340, %s343
      %p349 = scmp.eq.s32.totalorder %s32, 0
      %p350 = por %p348, %p349
      %p351 = scmp.ne.s32.totalorder %s340, %s343
      %p352 = scmp.eq.s32.totalorder %s37, 3
      %p353 = por %p351, %p352
      %p354 = scmp.ne.s32.totalorder %s343, %s344
      %p355 = scmp.eq.s32.totalorder %s37, 0
      %p356 = por %p354, %p355
      %p357 = scmp.ne.s32.totalorder %s343, %s344
      %p358 = scmp.eq.s32.totalorder %s38, 3
      %p359 = por %p357, %p358
      %p361 = scmp.ne.s32.totalorder %s344, %s360
      %p362 = scmp.eq.s32.totalorder %s38, 0
      %p363 = por %p361, %p362
      %s365 = sadd.s32 %s364, 1
      %p368 = scmp.eq.s32.totalorder %s32, 3
      %p369 = scmp.ne.s32.totalorder %s364, %s366
      %p370 = scmp.eq.s32.totalorder %s32, 0
      %p371 = por %p369, %p370
      %p372 = scmp.ne.s32.totalorder %s364, %s366
      %p373 = scmp.eq.s32.totalorder %s37, 3
      %p374 = por %p372, %p373
      %p375 = scmp.ne.s32.totalorder %s366, %s367
      %p376 = scmp.eq.s32.totalorder %s37, 0
      %p377 = por %p375, %p376
      %p378 = scmp.ne.s32.totalorder %s366, %s367
      %p379 = scmp.eq.s32.totalorder %s38, 3
      %p380 = por %p378, %p379
      %p382 = scmp.ne.s32.totalorder %s367, %s381
      %p383 = scmp.eq.s32.totalorder %s38, 0
      %p384 = por %p382, %p383
      %s386 = sadd.s32 %s385, 1
      %p389 = scmp.eq.s32.totalorder %s32, 3
      %p390 = scmp.ne.s32.totalorder %s385, %s387
      %p391 = scmp.eq.s32.totalorder %s32, 0
      %p392 = por %p390, %p391
      %p393 = scmp.ne.s32.totalorder %s385, %s387
      %p394 = scmp.eq.s32.totalorder %s37, 3
      %p395 = por %p393, %p394
      %p396 = scmp.ne.s32.totalorder %s387, %s388
      %p397 = scmp.eq.s32.totalorder %s37, 0
      %p398 = por %p396, %p397
      %p399 = scmp.ne.s32.totalorder %s387, %s388
      %p400 = scmp.eq.s32.totalorder %s38, 3
      %p401 = por %p399, %p400
      %p403 = scmp.ne.s32.totalorder %s388, %s402
      %p404 = scmp.eq.s32.totalorder %s38, 0
      %p405 = por %p403, %p404
      %s406 = ssub.s32 %s39, %s51
      %p407 = scmp.eq.s32.totalorder %s406, 0
      %s409 = sadd.s32 %s408, 1
      %s410 = scalar_select %p407, %s408, %s409
      %p413 = pneg %p407
      %p414 = scmp.eq.s32.totalorder %s32, 3
      %p415 = por %p413, %p414
      %p416 = scmp.ne.s32.totalorder %s408, %s411
      %p417 = scmp.eq.s32.totalorder %s32, 0
      %p418 = por %p416, %p417
      %p419 = scmp.ne.s32.totalorder %s408, %s411
      %p420 = scmp.eq.s32.totalorder %s37, 3
      %p421 = por %p419, %p420
      %p422 = scmp.ne.s32.totalorder %s411, %s412
      %p423 = scmp.eq.s32.totalorder %s37, 0
      %p424 = por %p422, %p423
      %p425 = scmp.ne.s32.totalorder %s411, %s412
      %p426 = scmp.eq.s32.totalorder %s38, 3
      %p427 = por %p425, %p426
      %p429 = scmp.ne.s32.totalorder %s412, %s428
      %p430 = scmp.eq.s32.totalorder %s38, 0
      %p431 = por %p429, %p430
      %p432 = scmp.le.s32.totalorder 1, %s32
      %p433 = scmp.lt.s32.totalorder %s32, 5
      %p434 = pnand %p432, %p433
      %p435 = pneg %p434
      // Predicated region
      $region9: #{tpu_custom_call.1} parent=5 // pred_check
        _
      $region10: #{tpu_custom_call.1} parent=5 // pred_check_branch
        %437 = sbr.rel (%p434) target = $region12
      $region11: #{tpu_custom_call.1} parent=5 // pred_region
        %s438 = ssub.s32 %s32, 1
        // Predicated region
        $region13: #{tpu_custom_call.1} parent=11 // pred_check
          %p439 = pneg %p377
        $region14: #{tpu_custom_call.1} parent=11 // pred_check_branch
          %441 = sbr.rel (%p439) target = $region16
        $region15: #{tpu_custom_call.1} parent=11 // pred_region
          _
        $region16: #{tpu_custom_call.1} parent=11 // pred_fallthru
          _
        // Predicated region
        $region17: #{tpu_custom_call.1} parent=11 // pred_check
          %p442 = pneg %p398
        $region18: #{tpu_custom_call.1} parent=11 // pred_check_branch
          %444 = sbr.rel (%p442) target = $region20
        $region19: #{tpu_custom_call.1} parent=11 // pred_region
          _
        $region20: #{tpu_custom_call.1} parent=11 // pred_fallthru
          _
      $region12: #{tpu_custom_call.1} parent=5 // pred_fallthru
        _
      %p445 = scmp.lt.s32.totalorder %s32, 4
      // Predicated region
      $region21: #{tpu_custom_call.1} parent=5 // pred_check
        %p446 = pneg %p445
      $region22: #{tpu_custom_call.1} parent=5 // pred_check_branch
        %448 = sbr.rel (%p446) target = $region24
      $region23: #{tpu_custom_call.1} parent=5 // pred_region
        // Predicated region
        $region25: #{tpu_custom_call.1} parent=23 // pred_check
          %p449 = pneg %p64
        $region26: #{tpu_custom_call.1} parent=23 // pred_check_branch
          %451 = sbr.rel (%p449) target = $region28
        $region27: #{tpu_custom_call.1} parent=23 // pred_region
          %s452 = sand.u32 %s54, 1
          %s453 = scalar_lea.sflag [#allocation5], %s452
          %s454 = sand.u32 %s54, 1
          %s455 = smul.addr %s454, 8
          %s456 = scalar_lea.vmem [#allocation4], %s455
          %s458 = ssub.s32 128, 128
          %459 = vsyncadd %s453, %s458
          %s460 = smul.addr %s39, 128
          %s461 = scalar_lea.hbm %s0, %s460
          %s463 = sshll.u32 %s456, 4
          %s464 = int_to_ptr.vmem [resolvable:$true] %s463
          %466 = dma.hbm_to_vmem [thread:$0]  %s461, 128, %s464, %s453
        $region28: #{tpu_custom_call.1} parent=23 // pred_fallthru
          _
        // Predicated region
        $region29: #{tpu_custom_call.1} parent=23 // pred_check
          %p467 = pneg %p90
        $region30: #{tpu_custom_call.1} parent=23 // pred_check_branch
          %469 = sbr.rel (%p467) target = $region32
        $region31: #{tpu_custom_call.1} parent=23 // pred_region
          %p470 = scmp.lt.s32.totalorder %s40, 1
          %s471 = scalar_select %p470, %s40, 1
          %s472 = scalar_lea.vmem %s1, %s471
        $region32: #{tpu_custom_call.1} parent=23 // pred_fallthru
          _
        // Predicated region
        $region33: #{tpu_custom_call.1} parent=23 // pred_check
          %p473 = pneg %p116
        $region34: #{tpu_custom_call.1} parent=23 // pred_check_branch
          %475 = sbr.rel (%p473) target = $region36
        $region35: #{tpu_custom_call.1} parent=23 // pred_region
          %p476 = scmp.lt.s32.totalorder %s40, 1
          %s477 = scalar_select %p476, %s40, 1
          %s478 = scalar_lea.vmem %s2, %s477
        $region36: #{tpu_custom_call.1} parent=23 // pred_fallthru
          _
        // Predicated region
        $region37: #{tpu_custom_call.1} parent=23 // pred_check
          %p479 = pneg %p142
        $region38: #{tpu_custom_call.1} parent=23 // pred_check_branch
          %481 = sbr.rel (%p479) target = $region40
        $region39: #{tpu_custom_call.1} parent=23 // pred_region
          %p482 = scmp.lt.s32.totalorder %s40, 1
          %s483 = scalar_select %p482, %s40, 1
          %s484 = smul.addr %s483, 4
          %s485 = smul.addr %s484, 4
          %s486 = scalar_lea.vmem %s3, %s485
        $region40: #{tpu_custom_call.1} parent=23 // pred_fallthru
          _
        // Predicated region
        $region41: #{tpu_custom_call.1} parent=23 // pred_check
          %p487 = pneg %p168
        $region42: #{tpu_custom_call.1} parent=23 // pred_check_branch
          %489 = sbr.rel (%p487) target = $region44
        $region43: #{tpu_custom_call.1} parent=23 // pred_region
          %p490 = scmp.lt.s32.totalorder %s40, 1
          %s491 = scalar_select %p490, %s40, 1
          %s492 = smul.addr %s491, 4
          %s493 = smul.addr %s492, 4
          %s494 = scalar_lea.vmem %s4, %s493
        $region44: #{tpu_custom_call.1} parent=23 // pred_fallthru
          _
        // Predicated region
        $region45: #{tpu_custom_call.1} parent=23 // pred_check
          %p495 = pneg %p194
        $region46: #{tpu_custom_call.1} parent=23 // pred_check_branch
          %497 = sbr.rel (%p495) target = $region48
        $region47: #{tpu_custom_call.1} parent=23 // pred_region
          %s498 = sand.u32 %s32, 1
          %s499 = scalar_lea.sflag [#allocation8], %s498
          %s500 = sand.u32 %s184, 1
          %s501 = scalar_lea.vmem [#allocation7], %s500
          %s503 = ssub.s32 16, 16
          %504 = vsyncadd %s499, %s503
          %s505 = smul.addr %s40, 16
          %s506 = scalar_lea.hbm %s5, %s505
          %s508 = sshll.u32 %s501, 4
          %s509 = int_to_ptr.vmem [resolvable:$true] %s508
          %511 = dma.hbm_to_vmem [thread:$0]  %s506, 16, %s509, %s499
        $region48: #{tpu_custom_call.1} parent=23 // pred_fallthru
          _
        // Predicated region
        $region49: #{tpu_custom_call.1} parent=23 // pred_check
          %p512 = pneg %p220
        $region50: #{tpu_custom_call.1} parent=23 // pred_check_branch
          %514 = sbr.rel (%p512) target = $region52
        $region51: #{tpu_custom_call.1} parent=23 // pred_region
          %s515 = sand.u32 %s32, 1
          %s516 = scalar_lea.sflag [#allocation8], %s515
          %s517 = sand.u32 %s210, 1
          %s518 = scalar_lea.vmem [#allocation9], %s517
          %s520 = ssub.s32 16, 16
          %521 = vsyncadd %s516, %s520
          %s522 = smul.addr %s40, 16
          %s523 = scalar_lea.hbm %s6, %s522
          %s525 = sshll.u32 %s518, 4
          %s526 = int_to_ptr.vmem [resolvable:$true] %s525
          %528 = dma.hbm_to_vmem [thread:$0]  %s523, 16, %s526, %s516
        $region52: #{tpu_custom_call.1} parent=23 // pred_fallthru
          _
        // Predicated region
        $region53: #{tpu_custom_call.1} parent=23 // pred_check
          %p529 = pneg %p246
        $region54: #{tpu_custom_call.1} parent=23 // pred_check_branch
          %531 = sbr.rel (%p529) target = $region56
        $region55: #{tpu_custom_call.1} parent=23 // pred_region
          %s532 = sand.u32 %s32, 1
          %s533 = scalar_lea.sflag [#allocation11], %s532
          %s534 = sand.u32 %s236, 1
          %s535 = scalar_lea.vmem [#allocation10], %s534
          %s537 = ssub.s32 16, 16
          %538 = vsyncadd %s533, %s537
          %s539 = smul.addr %s40, 16
          %s540 = scalar_lea.hbm %s7, %s539
          %s542 = sshll.u32 %s535, 4
          %s543 = int_to_ptr.vmem [resolvable:$true] %s542
          %545 = dma.hbm_to_vmem [thread:$0]  %s540, 16, %s543, %s533
        $region56: #{tpu_custom_call.1} parent=23 // pred_fallthru
          _
        // Predicated region
        $region57: #{tpu_custom_call.1} parent=23 // pred_check
          %p546 = pneg %p272
        $region58: #{tpu_custom_call.1} parent=23 // pred_check_branch
          %548 = sbr.rel (%p546) target = $region60
        $region59: #{tpu_custom_call.1} parent=23 // pred_region
          %p549 = scmp.lt.s32.totalorder %s40, 1
          %s550 = scalar_select %p549, %s40, 1
          %s551 = smul.addr %s550, 4
          %s552 = smul.addr %s551, 4
          %s553 = scalar_lea.vmem %s8, %s552
        $region60: #{tpu_custom_call.1} parent=23 // pred_fallthru
          _
        // Predicated region
        $region61: #{tpu_custom_call.1} parent=23 // pred_check
          %p554 = pneg %p298
        $region62: #{tpu_custom_call.1} parent=23 // pred_check_branch
          %556 = sbr.rel (%p554) target = $region64
        $region63: #{tpu_custom_call.1} parent=23 // pred_region
          %s557 = sand.u32 %s32, 1
          %s558 = scalar_lea.sflag [#allocation11], %s557
          %s559 = sand.u32 %s288, 1
          %s560 = scalar_lea.vmem [#allocation12], %s559
          %s562 = ssub.s32 16, 16
          %563 = vsyncadd %s558, %s562
          %s564 = smul.addr %s40, 16
          %s565 = scalar_lea.hbm %s9, %s564
          %s567 = sshll.u32 %s560, 4
          %s568 = int_to_ptr.vmem [resolvable:$true] %s567
          %570 = dma.hbm_to_vmem [thread:$0]  %s565, 16, %s568, %s558
        $region64: #{tpu_custom_call.1} parent=23 // pred_fallthru
          _
        // Predicated region
        $region65: #{tpu_custom_call.1} parent=23 // pred_check
          %p571 = pneg %p324
        $region66: #{tpu_custom_call.1} parent=23 // pred_check_branch
          %573 = sbr.rel (%p571) target = $region68
        $region67: #{tpu_custom_call.1} parent=23 // pred_region
          %p574 = scmp.lt.s32.totalorder %s40, 1
          %s575 = scalar_select %p574, %s40, 1
          %s576 = smul.addr %s575, 8
          %s577 = smul.addr %s576, 4
          %s578 = scalar_lea.vmem %s10, %s577
        $region68: #{tpu_custom_call.1} parent=23 // pred_fallthru
          _
        // Predicated region
        $region69: #{tpu_custom_call.1} parent=23 // pred_check
          %p579 = pneg %p350
        $region70: #{tpu_custom_call.1} parent=23 // pred_check_branch
          %581 = sbr.rel (%p579) target = $region72
        $region71: #{tpu_custom_call.1} parent=23 // pred_region
          %p582 = scmp.lt.s32.totalorder %s40, 1
          %s583 = scalar_select %p582, %s40, 1
          %s584 = scalar_lea.vmem %s11, %s583
        $region72: #{tpu_custom_call.1} parent=23 // pred_fallthru
          _
      $region24: #{tpu_custom_call.1} parent=5 // pred_fallthru
        _
      %p585 = scmp.le.s32.totalorder 1, %s32
      %p586 = scmp.lt.s32.totalorder %s32, 5
      %p587 = pnand %p585, %p586
      %p588 = pneg %p587
      // Predicated region
      $region73: #{tpu_custom_call.1} parent=5 // pred_check
        _
      $region74: #{tpu_custom_call.1} parent=5 // pred_check_branch
        %590 = sbr.rel (%p587) target = $region76
      $region75: #{tpu_custom_call.1} parent=5 // pred_region
        %s591 = ssub.s32 %s32, 1
        %s592 = sand.u32 %s57, 1
        %s593 = scalar_lea.sflag [#allocation5], %s592
        %s594 = sand.u32 %s57, 1
        %s595 = smul.addr %s594, 8
        %s596 = scalar_lea.vmem [#allocation4], %s595
        // Predicated region
        $region77: #{tpu_custom_call.1} parent=75 // pred_check
          %p597 = pneg %p70
        $region78: #{tpu_custom_call.1} parent=75 // pred_check_branch
          %599 = sbr.rel (%p597) target = $region80
        $region79: #{tpu_custom_call.1} parent=75 // pred_region
          %600 = dma.done %s593, 128
        $region80: #{tpu_custom_call.1} parent=75 // pred_fallthru
          _
        %s601 = sand.u32 %s37, 1
        %s602 = scalar_lea.sflag [#allocation8], %s601
        %s603 = sand.u32 %s187, 1
        %s604 = scalar_lea.vmem [#allocation7], %s603
        // Predicated region
        $region81: #{tpu_custom_call.1} parent=75 // pred_check
          %p605 = pneg %p200
        $region82: #{tpu_custom_call.1} parent=75 // pred_check_branch
          %607 = sbr.rel (%p605) target = $region84
        $region83: #{tpu_custom_call.1} parent=75 // pred_region
          %608 = dma.done %s602, 16
        $region84: #{tpu_custom_call.1} parent=75 // pred_fallthru
          _
        %s609 = sand.u32 %s37, 1
        %s610 = scalar_lea.sflag [#allocation8], %s609
        %s611 = sand.u32 %s213, 1
        %s612 = scalar_lea.vmem [#allocation9], %s611
        // Predicated region
        $region85: #{tpu_custom_call.1} parent=75 // pred_check
          %p613 = pneg %p226
        $region86: #{tpu_custom_call.1} parent=75 // pred_check_branch
          %615 = sbr.rel (%p613) target = $region88
        $region87: #{tpu_custom_call.1} parent=75 // pred_region
          %616 = dma.done %s610, 16
        $region88: #{tpu_custom_call.1} parent=75 // pred_fallthru
          _
        %s617 = sand.u32 %s37, 1
        %s618 = scalar_lea.sflag [#allocation11], %s617
        %s619 = sand.u32 %s239, 1
        %s620 = scalar_lea.vmem [#allocation10], %s619
        // Predicated region
        $region89: #{tpu_custom_call.1} parent=75 // pred_check
          %p621 = pneg %p252
        $region90: #{tpu_custom_call.1} parent=75 // pred_check_branch
          %623 = sbr.rel (%p621) target = $region92
        $region91: #{tpu_custom_call.1} parent=75 // pred_region
          %624 = dma.done %s618, 16
        $region92: #{tpu_custom_call.1} parent=75 // pred_fallthru
          _
        %s625 = sand.u32 %s37, 1
        %s626 = scalar_lea.sflag [#allocation11], %s625
        %s627 = sand.u32 %s291, 1
        %s628 = scalar_lea.vmem [#allocation12], %s627
        // Predicated region
        $region93: #{tpu_custom_call.1} parent=75 // pred_check
          %p629 = pneg %p304
        $region94: #{tpu_custom_call.1} parent=75 // pred_check_branch
          %631 = sbr.rel (%p629) target = $region96
        $region95: #{tpu_custom_call.1} parent=75 // pred_region
          %632 = dma.done %s626, 16
        $region96: #{tpu_custom_call.1} parent=75 // pred_fallthru
          _
        %s633 = sand.u32 %s57, 1
        %s634 = scalar_lea.sflag [#allocation5], %s633
        %s635 = sand.u32 %s57, 1
        %s636 = smul.addr %s635, 8
        %s637 = scalar_lea.vmem [#allocation4], %s636
        %p638 = pneg %p70
        %p639 = pneg %p67
        %p640 = scmp.lt.s32.totalorder %s42, 1
        %s641 = scalar_select %p640, %s42, 1
        %s642 = scalar_lea.vmem %s1, %s641
        %p643 = pneg %p96
        %p644 = pneg %p93
        %p645 = scmp.lt.s32.totalorder %s42, 1
        %s646 = scalar_select %p645, %s42, 1
        %s647 = scalar_lea.vmem %s2, %s646
        %p648 = pneg %p122
        %p649 = pneg %p119
        %p650 = scmp.lt.s32.totalorder %s42, 1
        %s651 = scalar_select %p650, %s42, 1
        %s652 = smul.addr %s651, 4
        %s653 = smul.addr %s652, 4
        %s654 = scalar_lea.vmem %s3, %s653
        %p655 = pneg %p148
        %p656 = pneg %p145
        %p657 = scmp.lt.s32.totalorder %s42, 1
        %s658 = scalar_select %p657, %s42, 1
        %s659 = smul.addr %s658, 4
        %s660 = smul.addr %s659, 4
        %s661 = scalar_lea.vmem %s4, %s660
        %p662 = pneg %p174
        %p663 = pneg %p171
        %s664 = sand.u32 %s37, 1
        %s665 = scalar_lea.sflag [#allocation8], %s664
        %s666 = sand.u32 %s187, 1
        %s667 = scalar_lea.vmem [#allocation7], %s666
        %p668 = pneg %p200
        %p669 = pneg %p197
        %s670 = sand.u32 %s37, 1
        %s671 = scalar_lea.sflag [#allocation8], %s670
        %s672 = sand.u32 %s213, 1
        %s673 = scalar_lea.vmem [#allocation9], %s672
        %p674 = pneg %p226
        %p675 = pneg %p223
        %s676 = sand.u32 %s37, 1
        %s677 = scalar_lea.sflag [#allocation11], %s676
        %s678 = sand.u32 %s239, 1
        %s679 = scalar_lea.vmem [#allocation10], %s678
        %p680 = pneg %p252
        %p681 = pneg %p249
        %p682 = scmp.lt.s32.totalorder %s42, 1
        %s683 = scalar_select %p682, %s42, 1
        %s684 = smul.addr %s683, 4
        %s685 = smul.addr %s684, 4
        %s686 = scalar_lea.vmem %s8, %s685
        %p687 = pneg %p278
        %p688 = pneg %p275
        %s689 = sand.u32 %s37, 1
        %s690 = scalar_lea.sflag [#allocation11], %s689
        %s691 = sand.u32 %s291, 1
        %s692 = scalar_lea.vmem [#allocation12], %s691
        %p693 = pneg %p304
        %p694 = pneg %p301
        %p695 = scmp.lt.s32.totalorder %s42, 1
        %s696 = scalar_select %p695, %s42, 1
        %s697 = smul.addr %s696, 8
        %s698 = smul.addr %s697, 4
        %s699 = scalar_lea.vmem %s10, %s698
        %p700 = pneg %p330
        %p701 = pneg %p327
        %p702 = scmp.lt.s32.totalorder %s42, 1
        %s703 = scalar_select %p702, %s42, 1
        %s704 = scalar_lea.vmem %s11, %s703
        %p705 = pneg %p356
        %p706 = pneg %p353
        %p707 = pneg %p377
        %p708 = pneg %p374
        %p709 = pneg %p398
        %p710 = pneg %p395
        %p711 = pneg %p424
        %p712 = pneg %p421
        %s713 = sand.u32 %s411, 1
        %s714 = scalar_lea.sflag [#allocation6], %s713
        %s715 = sand.u32 %s411, 1
        %s716 = smul.addr %s715, 8
        %s717 = scalar_lea.vmem [#allocation13], %s716
        %p718 = scmp.lt.s32.totalorder %s42, 1
        %s719 = scalar_select %p718, %s42, 1
        %s720 = scalar_lea.vmem %s1, %s719
        %p721 = scmp.lt.s32.totalorder %s42, 1
        %s722 = scalar_select %p721, %s42, 1
        %s723 = scalar_lea.vmem %s2, %s722
        %p724 = scmp.lt.s32.totalorder %s42, 1
        %s725 = scalar_select %p724, %s42, 1
        %s726 = smul.addr %s725, 4
        %s727 = smul.addr %s726, 4
        %s728 = scalar_lea.vmem %s3, %s727
        %p729 = scmp.lt.s32.totalorder %s42, 1
        %s730 = scalar_select %p729, %s42, 1
        %s731 = smul.addr %s730, 4
        %s732 = smul.addr %s731, 4
        %s733 = scalar_lea.vmem %s4, %s732
        %p734 = scmp.lt.s32.totalorder %s42, 1
        %s735 = scalar_select %p734, %s42, 1
        %s736 = smul.addr %s735, 4
        %s737 = smul.addr %s736, 4
        %s738 = scalar_lea.vmem %s8, %s737
        %p739 = scmp.lt.s32.totalorder %s42, 1
        %s740 = scalar_select %p739, %s42, 1
        %s741 = smul.addr %s740, 8
        %s742 = smul.addr %s741, 4
        %s743 = scalar_lea.vmem %s10, %s742
        %p744 = scmp.lt.s32.totalorder %s42, 1
        %s745 = scalar_select %p744, %s42, 1
        %s746 = scalar_lea.vmem %s11, %s745
        %p748 = scmp.eq.s32.totalorder %s42, 0
        // Predicated region
        $region97: #{tpu_custom_call.1} parent=75 // pred_check
          %p749 = pneg %p748
        $region98: #{tpu_custom_call.1} parent=75 // pred_check_branch
          %751 = sbr.rel (%p749) target = $region100
        $region99: #{tpu_custom_call.1} parent=75 // pred_region
          %v752 = vld [vmem:[%s596] sm:$0xff]
          %vm753 = vcmask 261120
          %754 = vst.msk [vmem:[#allocation2] sm:$0xff] %vm753, %v752
        $region100: #{tpu_custom_call.1} parent=75 // pred_fallthru
          _
        %v755 = vld [vmem:[#allocation2] sm:$0xff]
        %v756 = vld [vmem:[%s720] sm:$0x1]
        %v757 = vld [vmem:[%s723] sm:$0x1]
        %vm758 = vcmask 261120
        %v759 = vsel %vm758, %v755, 0.0
        %760 = vadd.xlane.f32.xlu0 %v759
        %v761 = vpop.xlane.xlu0 %760
        %v762 = vrcp.pop 32.0
        %v763 = vmul.f32 %v761, %v762
        %v764 = vsub.f32 %v755, %v763
        %v765 = vmul.f32 %v764, %v764
        %v766 = vsel %vm758, %v765, 0.0
        %767 = vadd.xlane.f32.xlu0 %v766
        %v768 = vpop.xlane.xlu0 %767
        %v769 = vmul.f32 %v768, %v762
        %v770 = vadd.f32 %v769, 1e-05
        %v771 = vrsqrt.pop %v770
        %v772 = vmul.f32 %v764, %v771
        %v774 = vlaneseq
        %v775 = vshrl.u32 %v774, 7
        %v776 = vsub.s32 0, %v775
        %v777 = vrot.slane %v756, %v776
        %v779 = vmul.f32 %v772, %v777
        %v781 = vlaneseq
        %v782 = vshrl.u32 %v781, 7
        %v783 = vsub.s32 0, %v782
        %v784 = vrot.slane %v757, %v783
        %v786 = vadd.f32 %v779, %v784
        %v787 = vpack.c.bf16 %v786, %v786
        %v788 = vld [vmem:[%s728] sm:$0xf]
        %v789 = vld [vmem:[%s728 + $0x4] sm:$0xf]
        %v790 = vld [vmem:[%s728 + $0x8] sm:$0xf]
        %v791 = vld [vmem:[%s728 + $0xc] sm:$0xf]
        %v796 = vunpack.c.l.b16 %v788
        %v797 = vunpack.c.l.b16 %v789
        %v798 = vunpack.c.l.b16 %v790
        %v799 = vunpack.c.l.b16 %v791
        %v800 = vpack.c.b16 %v797, %v796
        %v801 = vpack.c.b16 %v799, %v798
        %v805 = vsel %vm758, %v787, 0
        %807 = vmatprep.subr.bf16.mxu0 0
        %808 = vmatpush1.bf16.msra.mxu0 %v800
        %809 = vmatprep.subr.bf16.mxu0 0
        %810 = vmatpush1.bf16.msra.mxu0 %v801
        %811 = vmatprep.subr.bf16.mxu0 0
        %812 = vmatpush1.bf16.msra.mxu0 0
        %813 = vmatprep.subr.bf16.mxu0 0
        %814 = vmatpush1.bf16.msra.mxu0 0
        %815 = vmatprep.subr.bf16.mxu0 0
        %816 = vmatpush1.bf16.msra.mxu0 0
        %817 = vmatprep.subr.bf16.mxu0 0
        %818 = vmatpush1.bf16.msra.mxu0 0
        %819 = vmatprep.subr.bf16.mxu0 0
        %820 = vmatpush1.bf16.msra.mxu0 0
        %821 = vmatprep.subr.bf16.mxu0 0
        %822 = vmatpush1.bf16.msra.mxu0 0
        %823 = vmatprep.subr.bf16.mxu0 0
        %824 = vmatpush1.bf16.msra.mxu0 0
        %825 = vmatprep.subr.bf16.mxu0 0
        %826 = vmatpush1.bf16.msra.mxu0 0
        %827 = vmatprep.subr.bf16.mxu0 0
        %828 = vmatpush1.bf16.msra.mxu0 0
        %829 = vmatprep.subr.bf16.mxu0 0
        %830 = vmatpush1.bf16.msra.mxu0 0
        %831 = vmatprep.subr.bf16.mxu0 0
        %832 = vmatpush1.bf16.msra.mxu0 0
        %833 = vmatprep.subr.bf16.mxu0 0
        %834 = vmatpush1.bf16.msra.mxu0 0
        %835 = vmatprep.subr.bf16.mxu0 0
        %836 = vmatpush1.bf16.msra.mxu0 0
        %837 = vmatprep.subr.bf16.mxu0 0
        %838 = vmatpush1.bf16.msra.mxu0 0
        %839 = vmatprep.mubr.bf16.mxu0 0
        %840 = vmatmul.mubr.bf16.gmra.mrb[0].mxu0 %v805
        %v841 = vpop.f32.mrb[0].mxu0
        %v842 = vadd.f32 0.0, %v841
        %v843 = vpop.f32.mrb[0].mxu0
        %v844 = vpop.f32.mrb[0].mxu0
        %v845 = vpop.f32.mrb[0].mxu0
        %846 = vdwg.mxu0
        %v847 = vmul.f32 %v842, 0.35355338
        %v848 = vpack.c.bf16 %v847, %v847
        %v849 = vpack.c.bf16 %v842, %v842
        %851 = vrot.lane.b32.xlu0 %v849, 96
        %v852 = vpop.permute.xlu0 %851
        %vm853 = vcmask 64512
        %v855 = vsel %vm853, %v848, 0
        %v858 = vsel %vm853, %v852, 0
        %860 = vmatprep.subr.bf16.mxu0 0
        %861 = vmatpush1.bf16.xpose.msra.mxu0 %v858
        %862 = vmatprep.subr.bf16.mxu0 0
        %863 = vmatpush1.bf16.xpose.msra.mxu0 0
        %864 = vmatprep.subr.bf16.mxu0 0
        %865 = vmatpush1.bf16.xpose.msra.mxu0 0
        %866 = vmatprep.subr.bf16.mxu0 0
        %867 = vmatpush1.bf16.xpose.msra.mxu0 0
        %868 = vmatprep.subr.bf16.mxu0 0
        %869 = vmatpush1.bf16.xpose.msra.mxu0 0
        %870 = vmatprep.subr.bf16.mxu0 0
        %871 = vmatpush1.bf16.xpose.msra.mxu0 0
        %872 = vmatprep.subr.bf16.mxu0 0
        %873 = vmatpush1.bf16.xpose.msra.mxu0 0
        %874 = vmatprep.subr.bf16.mxu0 0
        %875 = vmatpush1.bf16.xpose.msra.mxu0 0
        %876 = vmatprep.subr.bf16.mxu0 0
        %877 = vmatpush1.bf16.xpose.msra.mxu0 0
        %878 = vmatprep.subr.bf16.mxu0 0
        %879 = vmatpush1.bf16.xpose.msra.mxu0 0
        %880 = vmatprep.subr.bf16.mxu0 0
        %881 = vmatpush1.bf16.xpose.msra.mxu0 0
        %882 = vmatprep.subr.bf16.mxu0 0
        %883 = vmatpush1.bf16.xpose.msra.mxu0 0
        %884 = vmatprep.subr.bf16.mxu0 0
        %885 = vmatpush1.bf16.xpose.msra.mxu0 0
        %886 = vmatprep.subr.bf16.mxu0 0
        %887 = vmatpush1.bf16.xpose.msra.mxu0 0
        %888 = vmatprep.subr.bf16.mxu0 0
        %889 = vmatpush1.bf16.xpose.msra.mxu0 0
        %890 = vmatprep.subr.bf16.mxu0 0
        %891 = vmatpush1.bf16.xpose.msra.mxu0 0
        %892 = vmatprep.mubr.bf16.mxu0 0
        %893 = vmatmul.mubr.bf16.gmra.mrb[0].mxu0 %v855
        %v894 = vpop.f32.mrb[0].mxu0
        %v895 = vadd.f32 0.0, %v894
        %v896 = vpop.f32.mrb[0].mxu0
        %v897 = vpop.f32.mrb[0].mxu0
        %v898 = vpop.f32.mrb[0].mxu0
        %899 = vdwg.mxu0
        %v900 = vsel %vm853, %v895, -inf
        %901 = vmax.xlane.f32.xlu0 %v900
        %v902 = vpop.xlane.xlu0 %901
        %v903 = vsub.f32 %v895, %v902
        %v904 = vmul.f32 %v903, 1.442695
        %v905 = vpow.pop %v904
        %v906 = vsel %vm853, %v905, 0.0
        %907 = vadd.xlane.f32.xlu0 %v906
        %v908 = vpop.xlane.xlu0 %907
        %v909 = vrcp.pop %v908
        %v910 = vmul.f32 %v905, %v909
        %v911 = vpack.c.bf16 %v910, %v910
        %912 = vrot.lane.b32.xlu0 %v849, 64
        %v913 = vpop.permute.xlu0 %912
        %v915 = vsel %vm853, %v911, 0
        %vm917 = vcmask 1043456
        %v919 = vsel %vm917, %v913, 0
        %921 = vmatprep.subr.bf16.mxu0 0
        %922 = vmatpush1.bf16.msra.mxu0 %v919
        %923 = vmatprep.subr.bf16.mxu0 0
        %924 = vmatpush1.bf16.msra.mxu0 0
        %925 = vmatprep.subr.bf16.mxu0 0
        %926 = vmatpush1.bf16.msra.mxu0 0
        %927 = vmatprep.subr.bf16.mxu0 0
        %928 = vmatpush1.bf16.msra.mxu0 0
        %929 = vmatprep.subr.bf16.mxu0 0
        %930 = vmatpush1.bf16.msra.mxu0 0
        %931 = vmatprep.subr.bf16.mxu0 0
        %932 = vmatpush1.bf16.msra.mxu0 0
        %933 = vmatprep.subr.bf16.mxu0 0
        %934 = vmatpush1.bf16.msra.mxu0 0
        %935 = vmatprep.subr.bf16.mxu0 0
        %936 = vmatpush1.bf16.msra.mxu0 0
        %937 = vmatprep.subr.bf16.mxu0 0
        %938 = vmatpush1.bf16.msra.mxu0 0
        %939 = vmatprep.subr.bf16.mxu0 0
        %940 = vmatpush1.bf16.msra.mxu0 0
        %941 = vmatprep.subr.bf16.mxu0 0
        %942 = vmatpush1.bf16.msra.mxu0 0
        %943 = vmatprep.subr.bf16.mxu0 0
        %944 = vmatpush1.bf16.msra.mxu0 0
        %945 = vmatprep.subr.bf16.mxu0 0
        %946 = vmatpush1.bf16.msra.mxu0 0
        %947 = vmatprep.subr.bf16.mxu0 0
        %948 = vmatpush1.bf16.msra.mxu0 0
        %949 = vmatprep.subr.bf16.mxu0 0
        %950 = vmatpush1.bf16.msra.mxu0 0
        %951 = vmatprep.subr.bf16.mxu0 0
        %952 = vmatpush1.bf16.msra.mxu0 0
        %953 = vmatprep.mubr.bf16.mxu0 0
        %954 = vmatmul.mubr.bf16.gmra.mrb[0].mxu0 %v915
        %v955 = vpop.f32.mrb[0].mxu0
        %v956 = vadd.f32 0.0, %v955
        %v957 = vpop.f32.mrb[0].mxu0
        %v958 = vpop.f32.mrb[0].mxu0
        %v959 = vpop.f32.mrb[0].mxu0
        %960 = vdwg.mxu0
        %961 = vst.msk [vmem:[#allocation3] sm:$0xff] %vm853, %v956
        %963 = vrot.lane.b32.xlu0 %v848, 120
        %v964 = vpop.permute.xlu0 %963
        %965 = vrot.lane.b32.xlu0 %v849, 88
        %v966 = vpop.permute.xlu0 %965
        %v968 = vsel %vm853, %v964, 0
        %v971 = vsel %vm853, %v966, 0
        %973 = vmatprep.subr.bf16.mxu0 0
        %974 = vmatpush1.bf16.xpose.msra.mxu0 %v971
        %975 = vmatprep.subr.bf16.mxu0 0
        %976 = vmatpush1.bf16.xpose.msra.mxu0 0
        %977 = vmatprep.subr.bf16.mxu0 0
        %978 = vmatpush1.bf16.xpose.msra.mxu0 0
        %979 = vmatprep.subr.bf16.mxu0 0
        %980 = vmatpush1.bf16.xpose.msra.mxu0 0
        %981 = vmatprep.subr.bf16.mxu0 0
        %982 = vmatpush1.bf16.xpose.msra.mxu0 0
        %983 = vmatprep.subr.bf16.mxu0 0
        %984 = vmatpush1.bf16.xpose.msra.mxu0 0
        %985 = vmatprep.subr.bf16.mxu0 0
        %986 = vmatpush1.bf16.xpose.msra.mxu0 0
        %987 = vmatprep.subr.bf16.mxu0 0
        %988 = vmatpush1.bf16.xpose.msra.mxu0 0
        %989 = vmatprep.subr.bf16.mxu0 0
        %990 = vmatpush1.bf16.xpose.msra.mxu0 0
        %991 = vmatprep.subr.bf16.mxu0 0
        %992 = vmatpush1.bf16.xpose.msra.mxu0 0
        %993 = vmatprep.subr.bf16.mxu0 0
        %994 = vmatpush1.bf16.xpose.msra.mxu0 0
        %995 = vmatprep.subr.bf16.mxu0 0
        %996 = vmatpush1.bf16.xpose.msra.mxu0 0
        %997 = vmatprep.subr.bf16.mxu0 0
        %998 = vmatpush1.bf16.xpose.msra.mxu0 0
        %999 = vmatprep.subr.bf16.mxu0 0
        %1000 = vmatpush1.bf16.xpose.msra.mxu0 0
        %1001 = vmatprep.subr.bf16.mxu0 0
        %1002 = vmatpush1.bf16.xpose.msra.mxu0 0
        %1003 = vmatprep.subr.bf16.mxu0 0
        %1004 = vmatpush1.bf16.xpose.msra.mxu0 0
        %1005 = vmatprep.mubr.bf16.mxu0 0
        %1006 = vmatmul.mubr.bf16.gmra.mrb[0].mxu0 %v968
        %v1007 = vpop.f32.mrb[0].mxu0
        %v1008 = vadd.f32 0.0, %v1007
        %v1009 = vpop.f32.mrb[0].mxu0
        %v1010 = vpop.f32.mrb[0].mxu0
        %v1011 = vpop.f32.mrb[0].mxu0
        %1012 = vdwg.mxu0
        %v1013 = vsel %vm853, %v1008, -inf
        %1014 = vmax.xlane.f32.xlu0 %v1013
        %v1015 = vpop.xlane.xlu0 %1014
        %v1016 = vsub.f32 %v1008, %v1015
        %v1017 = vmul.f32 %v1016, 1.442695
        %v1018 = vpow.pop %v1017
        %v1019 = vsel %vm853, %v1018, 0.0
        %1020 = vadd.xlane.f32.xlu0 %v1019
        %v1021 = vpop.xlane.xlu0 %1020
        %v1022 = vrcp.pop %v1021
        %v1023 = vmul.f32 %v1018, %v1022
        %v1024 = vpack.c.bf16 %v1023, %v1023
        %1025 = vrot.lane.b32.xlu0 %v849, 56
        %v1026 = vpop.permute.xlu0 %1025
        %v1028 = vsel %vm853, %v1024, 0
        %v1031 = vsel %vm917, %v1026, 0
        %1033 = vmatprep.subr.bf16.mxu0 0
        %1034 = vmatpush1.bf16.msra.mxu0 %v1031
        %1035 = vmatprep.subr.bf16.mxu0 0
        %1036 = vmatpush1.bf16.msra.mxu0 0
        %1037 = vmatprep.subr.bf16.mxu0 0
        %1038 = vmatpush1.bf16.msra.mxu0 0
        %1039 = vmatprep.subr.bf16.mxu0 0
        %1040 = vmatpush1.bf16.msra.mxu0 0
        %1041 = vmatprep.subr.bf16.mxu0 0
        %1042 = vmatpush1.bf16.msra.mxu0 0
        %1043 = vmatprep.subr.bf16.mxu0 0
        %1044 = vmatpush1.bf16.msra.mxu0 0
        %1045 = vmatprep.subr.bf16.mxu0 0
        %1046 = vmatpush1.bf16.msra.mxu0 0
        %1047 = vmatprep.subr.bf16.mxu0 0
        %1048 = vmatpush1.bf16.msra.mxu0 0
        %1049 = vmatprep.subr.bf16.mxu0 0
        %1050 = vmatpush1.bf16.msra.mxu0 0
        %1051 = vmatprep.subr.bf16.mxu0 0
        %1052 = vmatpush1.bf16.msra.mxu0 0
        %1053 = vmatprep.subr.bf16.mxu0 0
        %1054 = vmatpush1.bf16.msra.mxu0 0
        %1055 = vmatprep.subr.bf16.mxu0 0
        %1056 = vmatpush1.bf16.msra.mxu0 0
        %1057 = vmatprep.subr.bf16.mxu0 0
        %1058 = vmatpush1.bf16.msra.mxu0 0
        %1059 = vmatprep.subr.bf16.mxu0 0
        %1060 = vmatpush1.bf16.msra.mxu0 0
        %1061 = vmatprep.subr.bf16.mxu0 0
        %1062 = vmatpush1.bf16.msra.mxu0 0
        %1063 = vmatprep.subr.bf16.mxu0 0
        %1064 = vmatpush1.bf16.msra.mxu0 0
        %1065 = vmatprep.mubr.bf16.mxu0 0
        %1066 = vmatmul.mubr.bf16.gmra.mrb[0].mxu0 %v1028
        %v1067 = vpop.f32.mrb[0].mxu0
        %v1068 = vadd.f32 0.0, %v1067
        %v1069 = vpop.f32.mrb[0].mxu0
        %v1070 = vpop.f32.mrb[0].mxu0
        %v1071 = vpop.f32.mrb[0].mxu0
        %1072 = vdwg.mxu0
        %1074 = vrot.lane.b32.xlu0 %v1068, 8
        %v1075 = vpop.permute.xlu0 %1074
        %vm1077 = vcmask 130112
        %1078 = vst.msk [vmem:[#allocation3] sm:$0xff] %vm1077, %v1075
        %1079 = vrot.lane.b32.xlu0 %v848, 112
        %v1080 = vpop.permute.xlu0 %1079
        %1081 = vrot.lane.b32.xlu0 %v849, 80
        %v1082 = vpop.permute.xlu0 %1081
        %v1084 = vsel %vm853, %v1080, 0
        %v1087 = vsel %vm853, %v1082, 0
        %1089 = vmatprep.subr.bf16.mxu0 0
        %1090 = vmatpush1.bf16.xpose.msra.mxu0 %v1087
        %1091 = vmatprep.subr.bf16.mxu0 0
        %1092 = vmatpush1.bf16.xpose.msra.mxu0 0
        %1093 = vmatprep.subr.bf16.mxu0 0
        %1094 = vmatpush1.bf16.xpose.msra.mxu0 0
        %1095 = vmatprep.subr.bf16.mxu0 0
        %1096 = vmatpush1.bf16.xpose.msra.mxu0 0
        %1097 = vmatprep.subr.bf16.mxu0 0
        %1098 = vmatpush1.bf16.xpose.msra.mxu0 0
        %1099 = vmatprep.subr.bf16.mxu0 0
        %1100 = vmatpush1.bf16.xpose.msra.mxu0 0
        %1101 = vmatprep.subr.bf16.mxu0 0
        %1102 = vmatpush1.bf16.xpose.msra.mxu0 0
        %1103 = vmatprep.subr.bf16.mxu0 0
        %1104 = vmatpush1.bf16.xpose.msra.mxu0 0
        %1105 = vmatprep.subr.bf16.mxu0 0
        %1106 = vmatpush1.bf16.xpose.msra.mxu0 0
        %1107 = vmatprep.subr.bf16.mxu0 0
        %1108 = vmatpush1.bf16.xpose.msra.mxu0 0
        %1109 = vmatprep.subr.bf16.mxu0 0
        %1110 = vmatpush1.bf16.xpose.msra.mxu0 0
        %1111 = vmatprep.subr.bf16.mxu0 0
        %1112 = vmatpush1.bf16.xpose.msra.mxu0 0
        %1113 = vmatprep.subr.bf16.mxu0 0
        %1114 = vmatpush1.bf16.xpose.msra.mxu0 0
        %1115 = vmatprep.subr.bf16.mxu0 0
        %1116 = vmatpush1.bf16.xpose.msra.mxu0 0
        %1117 = vmatprep.subr.bf16.mxu0 0
        %1118 = vmatpush1.bf16.xpose.msra.mxu0 0
        %1119 = vmatprep.subr.bf16.mxu0 0
        %1120 = vmatpush1.bf16.xpose.msra.mxu0 0
        %1121 = vmatprep.mubr.bf16.mxu0 0
        %1122 = vmatmul.mubr.bf16.gmra.mrb[0].mxu0 %v1084
        %v1123 = vpop.f32.mrb[0].mxu0
        %v1124 = vadd.f32 0.0, %v1123
        %v1125 = vpop.f32.mrb[0].mxu0
        %v1126 = vpop.f32.mrb[0].mxu0
        %v1127 = vpop.f32.mrb[0].mxu0
        %1128 = vdwg.mxu0
        %v1129 = vsel %vm853, %v1124, -inf
        %1130 = vmax.xlane.f32.xlu0 %v1129
        %v1131 = vpop.xlane.xlu0 %1130
        %v1132 = vsub.f32 %v1124, %v1131
        %v1133 = vmul.f32 %v1132, 1.442695
        %v1134 = vpow.pop %v1133
        %v1135 = vsel %vm853, %v1134, 0.0
        %1136 = vadd.xlane.f32.xlu0 %v1135
        %v1137 = vpop.xlane.xlu0 %1136
        %v1138 = vrcp.pop %v1137
        %v1139 = vmul.f32 %v1134, %v1138
        %v1140 = vpack.c.bf16 %v1139, %v1139
        %1141 = vrot.lane.b32.xlu0 %v849, 48
        %v1142 = vpop.permute.xlu0 %1141
        %v1144 = vsel %vm853, %v1140, 0
        %v1147 = vsel %vm917, %v1142, 0
        %1149 = vmatprep.subr.bf16.mxu0 0
        %1150 = vmatpush1.bf16.msra.mxu0 %v1147
        %1151 = vmatprep.subr.bf16.mxu0 0
        %1152 = vmatpush1.bf16.msra.mxu0 0
        %1153 = vmatprep.subr.bf16.mxu0 0
        %1154 = vmatpush1.bf16.msra.mxu0 0
        %1155 = vmatprep.subr.bf16.mxu0 0
        %1156 = vmatpush1.bf16.msra.mxu0 0
        %1157 = vmatprep.subr.bf16.mxu0 0
        %1158 = vmatpush1.bf16.msra.mxu0 0
        %1159 = vmatprep.subr.bf16.mxu0 0
        %1160 = vmatpush1.bf16.msra.mxu0 0
        %1161 = vmatprep.subr.bf16.mxu0 0
        %1162 = vmatpush1.bf16.msra.mxu0 0
        %1163 = vmatprep.subr.bf16.mxu0 0
        %1164 = vmatpush1.bf16.msra.mxu0 0
        %1165 = vmatprep.subr.bf16.mxu0 0
        %1166 = vmatpush1.bf16.msra.mxu0 0
        %1167 = vmatprep.subr.bf16.mxu0 0
        %1168 = vmatpush1.bf16.msra.mxu0 0
        %1169 = vmatprep.subr.bf16.mxu0 0
        %1170 = vmatpush1.bf16.msra.mxu0 0
        %1171 = vmatprep.subr.bf16.mxu0 0
        %1172 = vmatpush1.bf16.msra.mxu0 0
        %1173 = vmatprep.subr.bf16.mxu0 0
        %1174 = vmatpush1.bf16.msra.mxu0 0
        %1175 = vmatprep.subr.bf16.mxu0 0
        %1176 = vmatpush1.bf16.msra.mxu0 0
        %1177 = vmatprep.subr.bf16.mxu0 0
        %1178 = vmatpush1.bf16.msra.mxu0 0
        %1179 = vmatprep.subr.bf16.mxu0 0
        %1180 = vmatpush1.bf16.msra.mxu0 0
        %1181 = vmatprep.mubr.bf16.mxu0 0
        %1182 = vmatmul.mubr.bf16.gmra.mrb[0].mxu0 %v1144
        %v1183 = vpop.f32.mrb[0].mxu0
        %v1184 = vadd.f32 0.0, %v1183
        %v1185 = vpop.f32.mrb[0].mxu0
        %v1186 = vpop.f32.mrb[0].mxu0
        %v1187 = vpop.f32.mrb[0].mxu0
        %1188 = vdwg.mxu0
        %1190 = vrot.lane.b32.xlu0 %v1184, 16
        %v1191 = vpop.permute.xlu0 %1190
        %vm1193 = vcmask 195712
        %1194 = vst.msk [vmem:[#allocation3] sm:$0xff] %vm1193, %v1191
        %1195 = vrot.lane.b32.xlu0 %v848, 104
        %v1196 = vpop.permute.xlu0 %1195
        %1197 = vrot.lane.b32.xlu0 %v849, 72
        %v1198 = vpop.permute.xlu0 %1197
        %v1200 = vsel %vm853, %v1196, 0
        %v1203 = vsel %vm853, %v1198, 0
        %1205 = vmatprep.subr.bf16.mxu0 0
        %1206 = vmatpush1.bf16.xpose.msra.mxu0 %v1203
        %1207 = vmatprep.subr.bf16.mxu0 0
        %1208 = vmatpush1.bf16.xpose.msra.mxu0 0
        %1209 = vmatprep.subr.bf16.mxu0 0
        %1210 = vmatpush1.bf16.xpose.msra.mxu0 0
        %1211 = vmatprep.subr.bf16.mxu0 0
        %1212 = vmatpush1.bf16.xpose.msra.mxu0 0
        %1213 = vmatprep.subr.bf16.mxu0 0
        %1214 = vmatpush1.bf16.xpose.msra.mxu0 0
        %1215 = vmatprep.subr.bf16.mxu0 0
        %1216 = vmatpush1.bf16.xpose.msra.mxu0 0
        %1217 = vmatprep.subr.bf16.mxu0 0
        %1218 = vmatpush1.bf16.xpose.msra.mxu0 0
        %1219 = vmatprep.subr.bf16.mxu0 0
        %1220 = vmatpush1.bf16.xpose.msra.mxu0 0
        %1221 = vmatprep.subr.bf16.mxu0 0
        %1222 = vmatpush1.bf16.xpose.msra.mxu0 0
        %1223 = vmatprep.subr.bf16.mxu0 0
        %1224 = vmatpush1.bf16.xpose.msra.mxu0 0
        %1225 = vmatprep.subr.bf16.mxu0 0
        %1226 = vmatpush1.bf16.xpose.msra.mxu0 0
        %1227 = vmatprep.subr.bf16.mxu0 0
        %1228 = vmatpush1.bf16.xpose.msra.mxu0 0
        %1229 = vmatprep.subr.bf16.mxu0 0
        %1230 = vmatpush1.bf16.xpose.msra.mxu0 0
        %1231 = vmatprep.subr.bf16.mxu0 0
        %1232 = vmatpush1.bf16.xpose.msra.mxu0 0
        %1233 = vmatprep.subr.bf16.mxu0 0
        %1234 = vmatpush1.bf16.xpose.msra.mxu0 0
        %1235 = vmatprep.subr.bf16.mxu0 0
        %1236 = vmatpush1.bf16.xpose.msra.mxu0 0
        %1237 = vmatprep.mubr.bf16.mxu0 0
        %1238 = vmatmul.mubr.bf16.gmra.mrb[0].mxu0 %v1200
        %v1239 = vpop.f32.mrb[0].mxu0
        %v1240 = vadd.f32 0.0, %v1239
        %v1241 = vpop.f32.mrb[0].mxu0
        %v1242 = vpop.f32.mrb[0].mxu0
        %v1243 = vpop.f32.mrb[0].mxu0
        %1244 = vdwg.mxu0
        %v1245 = vsel %vm853, %v1240, -inf
        %1246 = vmax.xlane.f32.xlu0 %v1245
        %v1247 = vpop.xlane.xlu0 %1246
        %v1248 = vsub.f32 %v1240, %v1247
        %v1249 = vmul.f32 %v1248, 1.442695
        %v1250 = vpow.pop %v1249
        %v1251 = vsel %vm853, %v1250, 0.0
        %1252 = vadd.xlane.f32.xlu0 %v1251
        %v1253 = vpop.xlane.xlu0 %1252
        %v1254 = vrcp.pop %v1253
        %v1255 = vmul.f32 %v1250, %v1254
        %v1256 = vpack.c.bf16 %v1255, %v1255
        %1257 = vrot.lane.b32.xlu0 %v849, 40
        %v1258 = vpop.permute.xlu0 %1257
        %v1260 = vsel %vm853, %v1256, 0
        %v1263 = vsel %vm917, %v1258, 0
        %1265 = vmatprep.subr.bf16.mxu0 0
        %1266 = vmatpush1.bf16.msra.mxu0 %v1263
        %1267 = vmatprep.subr.bf16.mxu0 0
        %1268 = vmatpush1.bf16.msra.mxu0 0
        %1269 = vmatprep.subr.bf16.mxu0 0
        %1270 = vmatpush1.bf16.msra.mxu0 0
        %1271 = vmatprep.subr.bf16.mxu0 0
        %1272 = vmatpush1.bf16.msra.mxu0 0
        %1273 = vmatprep.subr.bf16.mxu0 0
        %1274 = vmatpush1.bf16.msra.mxu0 0
        %1275 = vmatprep.subr.bf16.mxu0 0
        %1276 = vmatpush1.bf16.msra.mxu0 0
        %1277 = vmatprep.subr.bf16.mxu0 0
        %1278 = vmatpush1.bf16.msra.mxu0 0
        %1279 = vmatprep.subr.bf16.mxu0 0
        %1280 = vmatpush1.bf16.msra.mxu0 0
        %1281 = vmatprep.subr.bf16.mxu0 0
        %1282 = vmatpush1.bf16.msra.mxu0 0
        %1283 = vmatprep.subr.bf16.mxu0 0
        %1284 = vmatpush1.bf16.msra.mxu0 0
        %1285 = vmatprep.subr.bf16.mxu0 0
        %1286 = vmatpush1.bf16.msra.mxu0 0
        %1287 = vmatprep.subr.bf16.mxu0 0
        %1288 = vmatpush1.bf16.msra.mxu0 0
        %1289 = vmatprep.subr.bf16.mxu0 0
        %1290 = vmatpush1.bf16.msra.mxu0 0
        %1291 = vmatprep.subr.bf16.mxu0 0
        %1292 = vmatpush1.bf16.msra.mxu0 0
        %1293 = vmatprep.subr.bf16.mxu0 0
        %1294 = vmatpush1.bf16.msra.mxu0 0
        %1295 = vmatprep.subr.bf16.mxu0 0
        %1296 = vmatpush1.bf16.msra.mxu0 0
        %1297 = vmatprep.mubr.bf16.mxu0 0
        %1298 = vmatmul.mubr.bf16.gmra.mrb[0].mxu0 %v1260
        %v1299 = vpop.f32.mrb[0].mxu0
        %v1300 = vadd.f32 0.0, %v1299
        %v1301 = vpop.f32.mrb[0].mxu0
        %v1302 = vpop.f32.mrb[0].mxu0
        %v1303 = vpop.f32.mrb[0].mxu0
        %1304 = vdwg.mxu0
        %1306 = vrot.lane.b32.xlu0 %v1300, 24
        %v1307 = vpop.permute.xlu0 %1306
        %vm1309 = vcmask 261312
        %1310 = vst.msk [vmem:[#allocation3] sm:$0xff] %vm1309, %v1307
        %v1311 = vld [vmem:[#allocation3] sm:$0xff]
        %v1312 = vpack.c.bf16 %v1311, %v1311
        %v1313 = vld [vmem:[%s733] sm:$0xf]
        %v1314 = vld [vmem:[%s733 + $0x4] sm:$0xf]
        %v1315 = vld [vmem:[%s733 + $0x8] sm:$0xf]
        %v1316 = vld [vmem:[%s733 + $0xc] sm:$0xf]
        %v1317 = vld [vmem:[%s604] sm:$0x1]
        %v1319 = vlaneseq
        %v1320 = vshrl.u32 %v1319, 7
        %v1321 = vsub.s32 0, %v1320
        %v1322 = vrot.slane %v1317, %v1321
        %v1328 = vunpack.c.l.b16 %v1313
        %v1329 = vunpack.c.l.b16 %v1314
        %v1330 = vunpack.c.l.b16 %v1315
        %v1331 = vunpack.c.l.b16 %v1316
        %v1332 = vpack.c.b16 %v1329, %v1328
        %v1333 = vpack.c.b16 %v1331, %v1330
        %v1337 = vsel %vm758, %v1312, 0
        %1339 = vmatprep.subr.bf16.mxu0 0
        %1340 = vmatpush1.bf16.msra.mxu0 %v1332
        %1341 = vmatprep.subr.bf16.mxu0 0
        %1342 = vmatpush1.bf16.msra.mxu0 %v1333
        %1343 = vmatprep.subr.bf16.mxu0 0
        %1344 = vmatpush1.bf16.msra.mxu0 0
        %1345 = vmatprep.subr.bf16.mxu0 0
        %1346 = vmatpush1.bf16.msra.mxu0 0
        %1347 = vmatprep.subr.bf16.mxu0 0
        %1348 = vmatpush1.bf16.msra.mxu0 0
        %1349 = vmatprep.subr.bf16.mxu0 0
        %1350 = vmatpush1.bf16.msra.mxu0 0
        %1351 = vmatprep.subr.bf16.mxu0 0
        %1352 = vmatpush1.bf16.msra.mxu0 0
        %1353 = vmatprep.subr.bf16.mxu0 0
        %1354 = vmatpush1.bf16.msra.mxu0 0
        %1355 = vmatprep.subr.bf16.mxu0 0
        %1356 = vmatpush1.bf16.msra.mxu0 0
        %1357 = vmatprep.subr.bf16.mxu0 0
        %1358 = vmatpush1.bf16.msra.mxu0 0
        %1359 = vmatprep.subr.bf16.mxu0 0
        %1360 = vmatpush1.bf16.msra.mxu0 0
        %1361 = vmatprep.subr.bf16.mxu0 0
        %1362 = vmatpush1.bf16.msra.mxu0 0
        %1363 = vmatprep.subr.bf16.mxu0 0
        %1364 = vmatpush1.bf16.msra.mxu0 0
        %1365 = vmatprep.subr.bf16.mxu0 0
        %1366 = vmatpush1.bf16.msra.mxu0 0
        %1367 = vmatprep.subr.bf16.mxu0 0
        %1368 = vmatpush1.bf16.msra.mxu0 0
        %1369 = vmatprep.subr.bf16.mxu0 0
        %1370 = vmatpush1.bf16.msra.mxu0 0
        %1371 = vmatprep.mubr.bf16.mxu0 0
        %1372 = vmatmul.mubr.bf16.gmra.mrb[0].mxu0 %v1337
        %v1373 = vpop.f32.mrb[0].mxu0
        %v1374 = vadd.f32 %v1322, %v1373
        %v1375 = vpop.f32.mrb[0].mxu0
        %v1376 = vpop.f32.mrb[0].mxu0
        %v1377 = vpop.f32.mrb[0].mxu0
        %1378 = vdwg.mxu0
        %v1379 = vadd.f32 %v755, %v1374
        %v1380 = vld [vmem:[%s612] sm:$0x1]
        %v1381 = vld [vmem:[%s620] sm:$0x1]
        %v1382 = vsel %vm758, %v1379, 0.0
        %1383 = vadd.xlane.f32.xlu0 %v1382
        %v1384 = vpop.xlane.xlu0 %1383
        %v1385 = vmul.f32 %v1384, %v762
        %v1386 = vsub.f32 %v1379, %v1385
        %v1387 = vmul.f32 %v1386, %v1386
        %v1388 = vsel %vm758, %v1387, 0.0
        %1389 = vadd.xlane.f32.xlu0 %v1388
        %v1390 = vpop.xlane.xlu0 %1389
        %v1391 = vmul.f32 %v1390, %v762
        %v1392 = vadd.f32 %v1391, 1e-05
        %v1393 = vrsqrt.pop %v1392
        %v1394 = vmul.f32 %v1386, %v1393
        %v1396 = vlaneseq
        %v1397 = vshrl.u32 %v1396, 7
        %v1398 = vsub.s32 0, %v1397
        %v1399 = vrot.slane %v1380, %v1398
        %v1401 = vmul.f32 %v1394, %v1399
        %v1403 = vlaneseq
        %v1404 = vshrl.u32 %v1403, 7
        %v1405 = vsub.s32 0, %v1404
        %v1406 = vrot.slane %v1381, %v1405
        %v1408 = vadd.f32 %v1401, %v1406
        %v1409 = vpack.c.bf16 %v1408, %v1408
        %v1410 = vld [vmem:[%s738] sm:$0xf]
        %v1411 = vld [vmem:[%s738 + $0x4] sm:$0xf]
        %v1412 = vld [vmem:[%s738 + $0x8] sm:$0xf]
        %v1413 = vld [vmem:[%s738 + $0xc] sm:$0xf]
        %v1414 = vld [vmem:[%s628] sm:$0x1]
        %v1416 = vlaneseq
        %v1417 = vshrl.u32 %v1416, 7
        %v1418 = vsub.s32 0, %v1417
        %v1419 = vrot.slane %v1414, %v1418
        %v1425 = vunpack.c.l.b16 %v1410
        %v1426 = vunpack.c.l.b16 %v1411
        %v1427 = vunpack.c.l.b16 %v1412
        %v1428 = vunpack.c.l.b16 %v1413
        %v1429 = vpack.c.b16 %v1426, %v1425
        %v1430 = vpack.c.b16 %v1428, %v1427
        %v1434 = vsel %vm758, %v1409, 0
        %1436 = vmatprep.subr.bf16.mxu0 0
        %1437 = vmatpush1.bf16.msra.mxu0 %v1429
        %1438 = vmatprep.subr.bf16.mxu0 0
        %1439 = vmatpush1.bf16.msra.mxu0 %v1430
        %1440 = vmatprep.subr.bf16.mxu0 0
        %1441 = vmatpush1.bf16.msra.mxu0 0
        %1442 = vmatprep.subr.bf16.mxu0 0
        %1443 = vmatpush1.bf16.msra.mxu0 0
        %1444 = vmatprep.subr.bf16.mxu0 0
        %1445 = vmatpush1.bf16.msra.mxu0 0
        %1446 = vmatprep.subr.bf16.mxu0 0
        %1447 = vmatpush1.bf16.msra.mxu0 0
        %1448 = vmatprep.subr.bf16.mxu0 0
        %1449 = vmatpush1.bf16.msra.mxu0 0
        %1450 = vmatprep.subr.bf16.mxu0 0
        %1451 = vmatpush1.bf16.msra.mxu0 0
        %1452 = vmatprep.subr.bf16.mxu0 0
        %1453 = vmatpush1.bf16.msra.mxu0 0
        %1454 = vmatprep.subr.bf16.mxu0 0
        %1455 = vmatpush1.bf16.msra.mxu0 0
        %1456 = vmatprep.subr.bf16.mxu0 0
        %1457 = vmatpush1.bf16.msra.mxu0 0
        %1458 = vmatprep.subr.bf16.mxu0 0
        %1459 = vmatpush1.bf16.msra.mxu0 0
        %1460 = vmatprep.subr.bf16.mxu0 0
        %1461 = vmatpush1.bf16.msra.mxu0 0
        %1462 = vmatprep.subr.bf16.mxu0 0
        %1463 = vmatpush1.bf16.msra.mxu0 0
        %1464 = vmatprep.subr.bf16.mxu0 0
        %1465 = vmatpush1.bf16.msra.mxu0 0
        %1466 = vmatprep.subr.bf16.mxu0 0
        %1467 = vmatpush1.bf16.msra.mxu0 0
        %1468 = vmatprep.mubr.bf16.mxu0 0
        %1469 = vmatmul.mubr.bf16.gmra.mrb[0].mxu0 %v1434
        %v1470 = vpop.f32.mrb[0].mxu0
        %v1471 = vadd.f32 %v1419, %v1470
        %v1472 = vpop.f32.mrb[0].mxu0
        %v1473 = vpop.f32.mrb[0].mxu0
        %v1474 = vpop.f32.mrb[0].mxu0
        %1475 = vdwg.mxu0
        %v1476 = vmul.f32 %v1471, 0.5
        %v1477 = vmul.f32 %v1471, 0.70710677
        %v1478 = verf.f32.pop %v1477
        %v1479 = vadd.f32 %v1478, 1.0
        %v1480 = vmul.f32 %v1476, %v1479
        %v1481 = vpack.c.bf16 %v1480, %v1480
        %v1482 = vld [vmem:[%s743] sm:$0xf]
        %v1483 = vld [vmem:[%s743 + $0x4] sm:$0xf]
        %v1484 = vld [vmem:[%s743 + $0x8] sm:$0xf]
        %v1485 = vld [vmem:[%s743 + $0xc] sm:$0xf]
        %v1486 = vld [vmem:[%s743 + $0x10] sm:$0xf]
        %v1487 = vld [vmem:[%s743 + $0x14] sm:$0xf]
        %v1488 = vld [vmem:[%s743 + $0x18] sm:$0xf]
        %v1489 = vld [vmem:[%s743 + $0x1c] sm:$0xf]
        %v1490 = vld [vmem:[%s746] sm:$0x1]
        %v1492 = vlaneseq
        %v1493 = vshrl.u32 %v1492, 7
        %v1494 = vsub.s32 0, %v1493
        %v1495 = vrot.slane %v1490, %v1494
        %v1505 = vunpack.c.l.b16 %v1482
        %v1506 = vunpack.c.l.b16 %v1483
        %v1507 = vunpack.c.l.b16 %v1484
        %v1508 = vunpack.c.l.b16 %v1485
        %v1509 = vunpack.c.l.b16 %v1486
        %v1510 = vunpack.c.l.b16 %v1487
        %v1511 = vunpack.c.l.b16 %v1488
        %v1512 = vunpack.c.l.b16 %v1489
        %v1513 = vpack.c.b16 %v1506, %v1505
        %v1514 = vpack.c.b16 %v1508, %v1507
        %v1515 = vpack.c.b16 %v1510, %v1509
        %v1516 = vpack.c.b16 %v1512, %v1511
        %vm1521 = vcmask 523264
        %v1523 = vsel %vm1521, %v1481, 0
        %1525 = vmatprep.subr.bf16.mxu0 0
        %1526 = vmatpush1.bf16.msra.mxu0 %v1513
        %1527 = vmatprep.subr.bf16.mxu0 0
        %1528 = vmatpush1.bf16.msra.mxu0 %v1514
        %1529 = vmatprep.subr.bf16.mxu0 0
        %1530 = vmatpush1.bf16.msra.mxu0 %v1515
        %1531 = vmatprep.subr.bf16.mxu0 0
        %1532 = vmatpush1.bf16.msra.mxu0 %v1516
        %1533 = vmatprep.subr.bf16.mxu0 0
        %1534 = vmatpush1.bf16.msra.mxu0 0
        %1535 = vmatprep.subr.bf16.mxu0 0
        %1536 = vmatpush1.bf16.msra.mxu0 0
        %1537 = vmatprep.subr.bf16.mxu0 0
        %1538 = vmatpush1.bf16.msra.mxu0 0
        %1539 = vmatprep.subr.bf16.mxu0 0
        %1540 = vmatpush1.bf16.msra.mxu0 0
        %1541 = vmatprep.subr.bf16.mxu0 0
        %1542 = vmatpush1.bf16.msra.mxu0 0
        %1543 = vmatprep.subr.bf16.mxu0 0
        %1544 = vmatpush1.bf16.msra.mxu0 0
        %1545 = vmatprep.subr.bf16.mxu0 0
        %1546 = vmatpush1.bf16.msra.mxu0 0
        %1547 = vmatprep.subr.bf16.mxu0 0
        %1548 = vmatpush1.bf16.msra.mxu0 0
        %1549 = vmatprep.subr.bf16.mxu0 0
        %1550 = vmatpush1.bf16.msra.mxu0 0
        %1551 = vmatprep.subr.bf16.mxu0 0
        %1552 = vmatpush1.bf16.msra.mxu0 0
        %1553 = vmatprep.subr.bf16.mxu0 0
        %1554 = vmatpush1.bf16.msra.mxu0 0
        %1555 = vmatprep.subr.bf16.mxu0 0
        %1556 = vmatpush1.bf16.msra.mxu0 0
        %1557 = vmatprep.mubr.bf16.mxu0 0
        %1558 = vmatmul.mubr.bf16.gmra.mrb[0].mxu0 %v1523
        %v1559 = vpop.f32.mrb[0].mxu0
        %v1560 = vadd.f32 %v1495, %v1559
        %v1561 = vpop.f32.mrb[0].mxu0
        %v1562 = vpop.f32.mrb[0].mxu0
        %v1563 = vpop.f32.mrb[0].mxu0
        %1564 = vdwg.mxu0
        %v1565 = vadd.f32 %v1379, %v1560
        %p1566 = scmp.ne.s32.totalorder %s42, 1
        // Predicated region
        $region101: #{tpu_custom_call.1} parent=75 // pred_check
          %p1567 = pneg %p1566
        $region102: #{tpu_custom_call.1} parent=75 // pred_check_branch
          %1569 = sbr.rel (%p1567) target = $region104
        $region103: #{tpu_custom_call.1} parent=75 // pred_region
          %1570 = vst.msk [vmem:[#allocation2] sm:$0xff] %vm758, %v1565
        $region104: #{tpu_custom_call.1} parent=75 // pred_fallthru
          _
        %p1571 = scmp.eq.s32.totalorder %s42, 1
        // Predicated region
        $region105: #{tpu_custom_call.1} parent=75 // pred_check
          %p1572 = pneg %p1571
        $region106: #{tpu_custom_call.1} parent=75 // pred_check_branch
          %1574 = sbr.rel (%p1572) target = $region108
        $region107: #{tpu_custom_call.1} parent=75 // pred_region
          %v1575 = vld [vmem:[%s12] sm:$0x1]
          %v1576 = vld [vmem:[%s13] sm:$0x1]
          %v1577 = vsel %vm758, %v1565, 0.0
          %1578 = vadd.xlane.f32.xlu0 %v1577
          %v1579 = vpop.xlane.xlu0 %1578
          %v1580 = vmul.f32 %v1579, %v762
          %v1581 = vsub.f32 %v1565, %v1580
          %v1582 = vmul.f32 %v1581, %v1581
          %v1583 = vsel %vm758, %v1582, 0.0
          %1584 = vadd.xlane.f32.xlu0 %v1583
          %v1585 = vpop.xlane.xlu0 %1584
          %v1586 = vmul.f32 %v1585, %v762
          %v1587 = vadd.f32 %v1586, 1e-05
          %v1588 = vrsqrt.pop %v1587
          %v1589 = vmul.f32 %v1581, %v1588
          %v1591 = vlaneseq
          %v1592 = vshrl.u32 %v1591, 7
          %v1593 = vsub.s32 0, %v1592
          %v1594 = vrot.slane %v1575, %v1593
          %v1596 = vmul.f32 %v1589, %v1594
          %v1598 = vlaneseq
          %v1599 = vshrl.u32 %v1598, 7
          %v1600 = vsub.s32 0, %v1599
          %v1601 = vrot.slane %v1576, %v1600
          %v1603 = vadd.f32 %v1596, %v1601
          %1604 = vst.msk [vmem:[%s717] sm:$0xff] %vm758, %v1603
        $region108: #{tpu_custom_call.1} parent=75 // pred_fallthru
          _
        %s1605 = sand.u32 %s411, 1
        %s1606 = scalar_lea.sflag [#allocation6], %s1605
        %s1607 = sand.u32 %s411, 1
        %s1608 = smul.addr %s1607, 8
        %s1609 = scalar_lea.vmem [#allocation13], %s1608
        // Predicated region
        $region109: #{tpu_custom_call.1} parent=75 // pred_check
          %p1610 = pneg %p421
        $region110: #{tpu_custom_call.1} parent=75 // pred_check_branch
          %1612 = sbr.rel (%p1610) target = $region112
        $region111: #{tpu_custom_call.1} parent=75 // pred_region
          %s1614 = ssub.s32 128, 128
          %1615 = vsyncadd %s1606, %s1614
          %s1616 = smul.addr %s41, 128
          %s1617 = scalar_lea.hbm %s14, %s1616
          %s1619 = sshll.u32 %s1609, 4
          %s1620 = int_to_ptr.vmem [resolvable:$true] %s1619
          %1622 = dma.vmem_to_hbm [thread:$0]  %s1620, 128, %s1617, %s1606
        $region112: #{tpu_custom_call.1} parent=75 // pred_fallthru
          _
      $region76: #{tpu_custom_call.1} parent=5 // pred_fallthru
        _
      %p1623 = scmp.le.s32.totalorder 2, %s32
      // Predicated region
      $region113: #{tpu_custom_call.1} parent=5 // pred_check
        %p1624 = pneg %p1623
      $region114: #{tpu_custom_call.1} parent=5 // pred_check_branch
        %1626 = sbr.rel (%p1624) target = $region116
      $region115: #{tpu_custom_call.1} parent=5 // pred_region
        %s1627 = ssub.s32 %s32, 2
        // Predicated region
        $region117: #{tpu_custom_call.1} parent=115 // pred_check
          %p1628 = pneg %p427
        $region118: #{tpu_custom_call.1} parent=115 // pred_check_branch
          %1630 = sbr.rel (%p1628) target = $region120
        $region119: #{tpu_custom_call.1} parent=115 // pred_region
          %s1631 = sand.u32 %s412, 1
          %s1632 = scalar_lea.sflag [#allocation6], %s1631
          %s1633 = sand.u32 %s412, 1
          %s1634 = smul.addr %s1633, 8
          %s1635 = scalar_lea.vmem [#allocation13], %s1634
          %1636 = dma.done %s1632, 128
        $region120: #{tpu_custom_call.1} parent=115 // pred_fallthru
          _
      $region116: #{tpu_custom_call.1} parent=5 // pred_fallthru
        _
    $region6: #{tpu_custom_call.1} parent=1 // loop_footer
      %s36 = sadd.s32 1, %s32
    $region7: #{tpu_custom_call.1} parent=1 // loop_footer_branch
      %31 = sbr.rel target = $region3
    $region8: #{tpu_custom_call.1} parent=1 // loop_exit
      _
    %1637 = vsyncpa [#allocation5], 1
    %s1638 = scalar_lea.sflag [#allocation5], 1
    %1639 = vsyncpa %s1638, 1
    %1640 = vsyncpa [#allocation8], 1
    %s1641 = scalar_lea.sflag [#allocation8], 1
    %1642 = vsyncpa %s1641, 1
    %1643 = vsyncpa [#allocation11], 1
    %s1644 = scalar_lea.sflag [#allocation11], 1
    %1645 = vsyncpa %s1644, 1
    %1646 = vsyncpa [#allocation6], 1
    %s1647 = scalar_lea.sflag [#allocation6], 1
    %1648 = vsyncpa %s1647, 1

</llo_original>
